<compile_context>
chip_gen: v6e
topology: v6e:2x2x1
jax: 0.10.0
libtpu: 0.0.40
codegen_flags: <defaults>
</compile_context>

<pallas_src>
import math
from functools import partial

import jax
import jax.numpy as jnp
import numpy as np
from jax import lax
from jax.experimental import pallas as pl
from jax.experimental.pallas import tpu as pltpu

SQRT5 = math.sqrt(5.0)
LENGTHSCALE = math.log(2.0)   # gpytorch default: softplus(raw_lengthscale=0)
LANE = 128
_MAX_TILE = 16384             # lanes per grid step; VMEM-safe with the 48 MiB limit below
_FUSED_OK = {}                # (n_tau, D, out_dtype_name) -> bool, learned at runtime


def _round_up(x: int, m: int) -> int:
    return ((x + m - 1) // m) * m


def _cdiv(a: int, b: int) -> int:
    return -(-a // b)


def _matern52(d):
    """Matern nu=2.5 kernel on scaled distances, FMA-form polynomial."""
    poly = ((5.0 / 3.0) * d + SQRT5) * d + 1.0
    return poly * jnp.exp(-SQRT5 * d)


def _glm_kernel(t_ref, tau_ref, wT_ref, b_ref, o_ref, *, fuse_transpose, precision):
    # t_ref: [1, tile]  tau_ref: [n_tau, 1]  wT_ref: [D, n_tau]  b_ref: [D, 1]
    inv_ls = 1.0 / LENGTHSCALE
    # Scale the two *small* operands instead of the full [n_tau, tile] distance tile.
    t = t_ref[...] * inv_ls                       # [1, tile]    lane-dense row
    tau = tau_ref[...] * inv_ls                   # [n_tau, 1]
    k = _matern52(jnp.abs(tau - t))               # [n_tau, tile]  VPU + EUP, lane-dense
    # MXU matmul in the [D, tile] orientation: k streams densely (T on lanes).
    out = jnp.dot(wT_ref[...], k, preferred_element_type=jnp.float32,
                  precision=precision)            # [D, tile]  f32 accumulate
    out = out + b_ref[...]                        # bias [D, 1] broadcast
    if fuse_transpose:
        # In-kernel relayout to [tile, D] (XLU slot) so HBM output is already
        # row-major [T, D]; this removes the extra XLA transpose pass over the output.
        o_ref[...] = out.T.astype(o_ref.dtype)
    else:
        o_ref[...] = out.astype(o_ref.dtype)      # [D, tile], fully lane-dense stores


def _glm_xla(t, tau, w, b, precision):
    """Tiny-T fast path: plain fused XLA ops (no Pallas launch/pad overhead)."""
    d = jnp.abs(t[:, None] - tau.astype(jnp.float32)[None, :]) * (1.0 / LENGTHSCALE)
    k = _matern52(d)
    out = jnp.dot(k, w.astype(jnp.float32), preferred_element_type=jnp.float32,
                  precision=precision)
    return out + b.astype(jnp.float32)[None, :]


def glm_forward(t, tau, w, b, *,
                t_tile: int = _MAX_TILE,
                out_dtype=jnp.float32,
                matmul_precision=lax.Precision.HIGHEST,
                small_t_threshold: int = 512,
                min_grid_steps: int = 2,
                fuse_transpose=None,          # None = auto (try fused, fall back)
                return_transposed: bool = False):
    """GLM forward. t: [T] or scalar. Returns [T, D] (or [D, T] if return_transposed)."""
    t = jnp.atleast_1d(jnp.asarray(t)).astype(jnp.float32)
    T = int(t.shape[0])
    n_tau = int(tau.shape[0])
    D = int(w.shape[1])

    # Tiny-T: a fused XLA op is strictly cheaper than a padded 128-lane Pallas launch.
    if T < small_t_threshold:
        out = _glm_xla(t, tau, w, b, matmul_precision).astype(out_dtype)
        return out.T if return_transposed else out

    # Lane tile: large (amortize ~0.35 us/step), multiple of 128, capped for VMEM,
    # and small enough that the grid has >= min_grid_steps steps (both TCs on v7x).
    tile = _round_up(min(int(t_tile), _MAX_TILE), LANE)
    tile = min(tile, _round_up(T, LANE))
    if min_grid_steps > 1:
        tile = min(tile, max(LANE, _round_up(_cdiv(_round_up(T, LANE), min_grid_steps),
                                             LANE)))
    T_pad = _round_up(T, tile)

    t_row = jnp.pad(t, (0, T_pad - T)).reshape(1, T_pad)          # [1, T_pad]
    tau_col = tau.astype(jnp.float32).reshape(n_tau, 1)           # [n_tau, 1]
    wT = jnp.transpose(w.astype(jnp.float32))                     # [D, n_tau]
    b_col = b.astype(jnp.float32).reshape(D, 1)                   # [D, 1]

    out_itemsize = np.dtype(out_dtype).itemsize

    def _call(fuse):
        kern = partial(_glm_kernel, fuse_transpose=fuse, precision=matmul_precision)
        if fuse:
            out_shape = jax.ShapeDtypeStruct((T_pad, D), out_dtype)
            out_spec = pl.BlockSpec((tile, D), lambda i: (i, 0))   # row-major [T, D] blocks
        else:
            out_shape = jax.ShapeDtypeStruct((D, T_pad), out_dtype)
            out_spec = pl.BlockSpec((D, tile), lambda i: (0, i))   # lane-dense [D, T] blocks
        cost = pl.CostEstimate(
            flops=int(2 * T_pad * n_tau * D + 10 * T_pad * n_tau),
            transcendentals=int(T_pad * n_tau),
            bytes_accessed=int(4 * (T_pad + n_tau + n_tau * D + D)
                               + T_pad * D * out_itemsize),
        )
        return pl.pallas_call(
            kern,
            out_shape=out_shape,
            grid=(T_pad // tile,),
            in_specs=[
                pl.BlockSpec((1, tile), lambda i: (0, i)),         # t   (tiled on lanes)
                pl.BlockSpec((n_tau, 1), lambda i: (0, 0)),        # tau (resident)
                pl.BlockSpec((D, n_tau), lambda i: (0, 0)),        # w.T (resident)
                pl.BlockSpec((D, 1), lambda i: (0, 0)),            # b   (resident)
            ],
            out_specs=out_spec,
            compiler_params=pltpu.CompilerParams(
                dimension_semantics=("parallel",),                 # 2 TCs on v7x
                vmem_limit_bytes=48 * 1024 * 1024,                 # large tiles, all gens
            ),
            cost_estimate=cost,
        )(t_row, tau_col, wT, b_col)

    if return_transposed:
        # Review "best" option: stay in [D, T]; fully lane-dense stores, no relayout.
        return _call(False)[:, :T]

    key_ = (n_tau, D, np.dtype(out_dtype).name)
    fuse = _FUSED_OK.get(key_, True) if fuse_transpose is None else bool(fuse_transpose)
    if fuse:
        try:
            out = _call(True)
            if key_ not in _FUSED_OK:
                out = jax.block_until_ready(out)   # surface lowering/compile issues here
                _FUSED_OK[key_] = True
            return out[:T]
        except Exception:
            if fuse_transpose:   # explicitly requested fused path -> propagate
                raise
            _FUSED_OK[key_] = False
    # Fallback: proven [D, T] kernel + XLA transpose (one extra HBM pass over the output).
    return jnp.transpose(_call(False)[:, :T])


def init_glm_params(a, b_hi, n_tau, output_size, key):
    """Parameter init mirroring GLM.__init__ (host-side NumPy/JAX glue, not a kernel)."""
    tau = np.linspace(a, b_hi, n_tau).astype(np.float64)

    d = np.abs(tau[:, None] - tau[None, :]) / LENGTHSCALE
    Ktt = (1.0 + SQRT5 * d + (5.0 / 3.0) * d * d) * np.exp(-SQRT5 * d)

    Kinv = np.linalg.inv(Ktt)
    Kinv = 0.5 * (Kinv + Kinv.T)  # symmetrize for numerical stability
    L = np.linalg.cholesky(Kinv + 1e-4 * np.eye(n_tau))
    z = np.asarray(jax.random.normal(key, (n_tau, output_size), dtype=jnp.float32),
                   dtype=np.float64)
    w = L @ z

    bias = np.zeros((output_size,), dtype=np.float32)
    return (jnp.asarray(tau, dtype=jnp.float32),
            jnp.asarray(w, dtype=jnp.float32),
            jnp.asarray(bias, dtype=jnp.float32))


def glm_reference_f64(t, tau, w, b):
    """float64 NumPy reference for correctness checks."""
    t = np.atleast_1d(np.asarray(t, dtype=np.float64))
    tau = np.asarray(tau, dtype=np.float64)
    w = np.asarray(w, dtype=np.float64)
    b = np.asarray(b, dtype=np.float64)
    d = np.abs(t[:, None] - tau[None, :]) / LENGTHSCALE
    k = (1.0 + SQRT5 * d + (5.0 / 3.0) * d * d) * np.exp(-SQRT5 * d)
    return k @ w + b[None, :]


# TODO(synk): only the default matern52 kernel with fixed inducing locations is
# implemented; matern32 / rbf constructor options and learn_inducing_locations=True
# (trainable tau) are not translated.

if __name__ == "__main__":
    a_lo, b_hi = 0.0, 5.0
    n_tau = 16
    output_size = 32

    key = jax.random.PRNGKey(0)
    k_w, k_t_small, k_t_big = jax.random.split(key, 3)

    tau, w, bias = init_glm_params(a_lo, b_hi, n_tau, output_size, k_w)

    # 1) Small shape consistent with the module (T=8): tiny-T XLA fast path.
    t_small = jax.random.uniform(k_t_small, (8,), minval=a_lo, maxval=b_hi,
                                 dtype=jnp.float32)
    ref_small = glm_reference_f64(t_small, tau, w, bias)
    out_small = jax.block_until_ready(glm_forward(t_small, tau, w, bias))
    assert out_small.shape == (8, output_size), out_small.shape
    np.testing.assert_allclose(np.asarray(out_small, dtype=np.float64), ref_small,
                               rtol=2e-3, atol=2e-3)

    # 2) Same small T forced through the Pallas kernel (single 128-lane tile, pad path).
    out_small_k = jax.block_until_ready(
        glm_forward(t_small, tau, w, bias, small_t_threshold=0))
    assert out_small_k.shape == (8, output_size), out_small_k.shape
    np.testing.assert_allclose(np.asarray(out_small_k, dtype=np.float64), ref_small,
                               rtol=2e-3, atol=2e-3)

    # 3) Larger T: tiled Pallas path with a >=2-step "parallel" grid, fused [T, D] output.
    t_big = jax.random.uniform(k_t_big, (4096,), minval=a_lo, maxval=b_hi,
                               dtype=jnp.float32)
    ref_big = glm_reference_f64(t_big, tau, w, bias)
    out_big = jax.block_until_ready(glm_forward(t_big, tau, w, bias))
    assert out_big.shape == (4096, output_size), out_big.shape
    np.testing.assert_allclose(np.asarray(out_big, dtype=np.float64), ref_big,
                               rtol=2e-3, atol=2e-3)

    # 4) bf16 output store (halves HBM writeback); matmul still accumulates in f32.
    out_bf16 = jax.block_until_ready(
        glm_forward(t_big, tau, w, bias, out_dtype=jnp.bfloat16))
    assert out_bf16.shape == (4096, output_size) and out_bf16.dtype == jnp.bfloat16
    np.testing.assert_allclose(np.asarray(out_bf16, dtype=np.float64), ref_big,
                               rtol=3e-2, atol=3e-2)

    # 5) Optional [D, T] layout for consumers that can stay transposed.
    out_dt = jax.block_until_ready(
        glm_forward(t_big, tau, w, bias, return_transposed=True))
    assert out_dt.shape == (output_size, 4096), out_dt.shape
    np.testing.assert_allclose(np.asarray(out_dt, dtype=np.float64), ref_big.T,
                               rtol=2e-3, atol=2e-3)

    print("KERNEL_OK")
</pallas_src>

<mosaic_0001>
module attributes {stable_mosaic.version = 11 : i64} {
  func.func @_glm_kernel(%arg0: i32, %arg1: memref<1x128xf32, #tpu.memory_space<vmem>>, %arg2: memref<16x1xf32, #tpu.memory_space<vmem>>, %arg3: memref<32x16xf32, #tpu.memory_space<vmem>>, %arg4: memref<32x1xf32, #tpu.memory_space<vmem>>, %arg5: memref<128x32xf32, #tpu.memory_space<vmem>>) attributes {dimension_semantics = [#tpu.dimension_semantics<parallel>], iteration_bounds = array<i64: 1>, scalar_prefetch = 0 : i64, scratch_operands = 0 : i64, tpu.core_type = #tpu.core_type<tc>, window_params = [{transform_indices = @transform_0, window_bounds = array<i64: 1, 128>}, {pipeline_mode = #tpu.pipeline_mode<synchronous>, transform_indices = @transform_1, window_bounds = array<i64: 16, 1>}, {pipeline_mode = #tpu.pipeline_mode<synchronous>, transform_indices = @transform_2, window_bounds = array<i64: 32, 16>}, {pipeline_mode = #tpu.pipeline_mode<synchronous>, transform_indices = @transform_3, window_bounds = array<i64: 32, 1>}, {transform_indices = @transform_4, window_bounds = array<i64: 128, 32>}]} {
    %c0 = arith.constant 0 : index
    %c0_0 = arith.constant 0 : index
    %0 = vector.load %arg1[%c0, %c0_0] : memref<1x128xf32, #tpu.memory_space<vmem>>, vector<1x128xf32>
    %cst = arith.constant 1.44269502 : f32
    %1 = vector.broadcast %cst : f32 to vector<1x128xf32>
    %2 = arith.mulf %0, %1 : vector<1x128xf32>
    %c0_1 = arith.constant 0 : index
    %c0_2 = arith.constant 0 : index
    %3 = vector.load %arg2[%c0_1, %c0_2] : memref<16x1xf32, #tpu.memory_space<vmem>>, vector<16x1xf32>
    %cst_3 = arith.constant 1.44269502 : f32
    %4 = vector.broadcast %cst_3 : f32 to vector<16x1xf32>
    %5 = arith.mulf %3, %4 : vector<16x1xf32>
    %6 = vector.broadcast %5 : vector<16x1xf32> to vector<16x128xf32>
    %7 = vector.broadcast %2 : vector<1x128xf32> to vector<16x128xf32>
    %8 = arith.subf %6, %7 : vector<16x128xf32>
    %9 = math.absf %8 : vector<16x128xf32>
    %cst_4 = arith.constant 1.66666663 : f32
    %10 = vector.broadcast %cst_4 : f32 to vector<16x128xf32>
    %11 = arith.mulf %10, %9 : vector<16x128xf32>
    %cst_5 = arith.constant 2.23606801 : f32
    %12 = vector.broadcast %cst_5 : f32 to vector<16x128xf32>
    %13 = arith.addf %11, %12 : vector<16x128xf32>
    %14 = arith.mulf %13, %9 : vector<16x128xf32>
    %cst_6 = arith.constant 1.000000e+00 : f32
    %15 = vector.broadcast %cst_6 : f32 to vector<16x128xf32>
    %16 = arith.addf %14, %15 : vector<16x128xf32>
    %cst_7 = arith.constant -2.23606801 : f32
    %17 = vector.broadcast %cst_7 : f32 to vector<16x128xf32>
    %18 = arith.mulf %17, %9 : vector<16x128xf32>
    %19 = math.exp %18 : vector<16x128xf32>
    %20 = arith.mulf %16, %19 : vector<16x128xf32>
    %c0_8 = arith.constant 0 : index
    %c0_9 = arith.constant 0 : index
    %21 = vector.load %arg3[%c0_8, %c0_9] : memref<32x16xf32, #tpu.memory_space<vmem>>, vector<32x16xf32>
    %cst_10 = arith.constant dense<0.000000e+00> : vector<32x128xf32>
    %22 = tpu.matmul %21, %20, %cst_10 {dimension_numbers = #tpu.dot_dimension_numbers<[1], [0], [0], [1], [0, 0, 1, 1], [], []>, precision = #tpu.contract_precision<fp32>} : vector<32x16xf32>, vector<16x128xf32>, vector<32x128xf32> -> vector<32x128xf32>
    %c0_11 = arith.constant 0 : index
    %c0_12 = arith.constant 0 : index
    %23 = vector.load %arg4[%c0_11, %c0_12] : memref<32x1xf32, #tpu.memory_space<vmem>>, vector<32x1xf32>
    %24 = vector.broadcast %23 : vector<32x1xf32> to vector<32x128xf32>
    %25 = arith.addf %22, %24 : vector<32x128xf32>
    %26 = tpu.transpose %25, [1, 0] : vector<32x128xf32> -> vector<128x32xf32>
    %c0_13 = arith.constant 0 : index
    %c0_14 = arith.constant 0 : index
    %27 = vector.load %arg5[%c0_13, %c0_14] : memref<128x32xf32, #tpu.memory_space<vmem>>, vector<128x32xf32>
    tpu.vector_store %arg5[%c0_13, %c0_14], %26 {strides = array<i32>} : memref<128x32xf32, #tpu.memory_space<vmem>>, vector<128x32xf32>,
    return
  }
  func.func @transform_0(%arg0: i32) -> (i32, i32) {
    %c0_i32 = arith.constant 0 : i32
    %c0_i32_0 = arith.constant 0 : i32
    return %c0_i32, %arg0 : i32, i32
  }
  func.func @transform_1(%arg0: i32) -> (i32, i32) {
    %c0_i32 = arith.constant 0 : i32
    %c0_i32_0 = arith.constant 0 : i32
    %c0_i32_1 = arith.constant 0 : i32
    return %c0_i32, %c0_i32_0 : i32, i32
  }
  func.func @transform_2(%arg0: i32) -> (i32, i32) {
    %c0_i32 = arith.constant 0 : i32
    %c0_i32_0 = arith.constant 0 : i32
    %c0_i32_1 = arith.constant 0 : i32
    return %c0_i32, %c0_i32_0 : i32, i32
  }
  func.func @transform_3(%arg0: i32) -> (i32, i32) {
    %c0_i32 = arith.constant 0 : i32
    %c0_i32_0 = arith.constant 0 : i32
    %c0_i32_1 = arith.constant 0 : i32
    return %c0_i32, %c0_i32_0 : i32, i32
  }
  func.func @transform_4(%arg0: i32) -> (i32, i32) {
    %c0_i32 = arith.constant 0 : i32
    %c0_i32_0 = arith.constant 0 : i32
    return %arg0, %c0_i32 : i32, i32
  }
}

module attributes {stable_mosaic.version = 11 : i64} {
  func.func @_glm_kernel(%arg0: i32, %arg1: memref<1x128xf32, #tpu.memory_space<vmem>>, %arg2: memref<16x1xf32, #tpu.memory_space<vmem>>, %arg3: memref<32x16xf32, #tpu.memory_space<vmem>>, %arg4: memref<32x1xf32, #tpu.memory_space<vmem>>, %arg5: memref<32x128xf32, #tpu.memory_space<vmem>>) attributes {dimension_semantics = [#tpu.dimension_semantics<parallel>], iteration_bounds = array<i64: 1>, scalar_prefetch = 0 : i64, scratch_operands = 0 : i64, tpu.core_type = #tpu.core_type<tc>, window_params = [{transform_indices = @transform_0, window_bounds = array<i64: 1, 128>}, {pipeline_mode = #tpu.pipeline_mode<synchronous>, transform_indices = @transform_1, window_bounds = array<i64: 16, 1>}, {pipeline_mode = #tpu.pipeline_mode<synchronous>, transform_indices = @transform_2, window_bounds = array<i64: 32, 16>}, {pipeline_mode = #tpu.pipeline_mode<synchronous>, transform_indices = @transform_3, window_bounds = array<i64: 32, 1>}, {transform_indices = @transform_4, window_bounds = array<i64: 32, 128>}]} {
    %c0 = arith.constant 0 : index
    %c0_0 = arith.constant 0 : index
    %0 = vector.load %arg1[%c0, %c0_0] : memref<1x128xf32, #tpu.memory_space<vmem>>, vector<1x128xf32>
    %cst = arith.constant 1.44269502 : f32
    %1 = vector.broadcast %cst : f32 to vector<1x128xf32>
    %2 = arith.mulf %0, %1 : vector<1x128xf32>
    %c0_1 = arith.constant 0 : index
    %c0_2 = arith.constant 0 : index
    %3 = vector.load %arg2[%c0_1, %c0_2] : memref<16x1xf32, #tpu.memory_space<vmem>>, vector<16x1xf32>
    %cst_3 = arith.constant 1.44269502 : f32
    %4 = vector.broadcast %cst_3 : f32 to vector<16x1xf32>
    %5 = arith.mulf %3, %4 : vector<16x1xf32>
    %6 = vector.broadcast %5 : vector<16x1xf32> to vector<16x128xf32>
    %7 = vector.broadcast %2 : vector<1x128xf32> to vector<16x128xf32>
    %8 = arith.subf %6, %7 : vector<16x128xf32>
    %9 = math.absf %8 : vector<16x128xf32>
    %cst_4 = arith.constant 1.66666663 : f32
    %10 = vector.broadcast %cst_4 : f32 to vector<16x128xf32>
    %11 = arith.mulf %10, %9 : vector<16x128xf32>
    %cst_5 = arith.constant 2.23606801 : f32
    %12 = vector.broadcast %cst_5 : f32 to vector<16x128xf32>
    %13 = arith.addf %11, %12 : vector<16x128xf32>
    %14 = arith.mulf %13, %9 : vector<16x128xf32>
    %cst_6 = arith.constant 1.000000e+00 : f32
    %15 = vector.broadcast %cst_6 : f32 to vector<16x128xf32>
    %16 = arith.addf %14, %15 : vector<16x128xf32>
    %cst_7 = arith.constant -2.23606801 : f32
    %17 = vector.broadcast %cst_7 : f32 to vector<16x128xf32>
    %18 = arith.mulf %17, %9 : vector<16x128xf32>
    %19 = math.exp %18 : vector<16x128xf32>
    %20 = arith.mulf %16, %19 : vector<16x128xf32>
    %c0_8 = arith.constant 0 : index
    %c0_9 = arith.constant 0 : index
    %21 = vector.load %arg3[%c0_8, %c0_9] : memref<32x16xf32, #tpu.memory_space<vmem>>, vector<32x16xf32>
    %cst_10 = arith.constant dense<0.000000e+00> : vector<32x128xf32>
    %22 = tpu.matmul %21, %20, %cst_10 {dimension_numbers = #tpu.dot_dimension_numbers<[1], [0], [0], [1], [0, 0, 1, 1], [], []>, precision = #tpu.contract_precision<fp32>} : vector<32x16xf32>, vector<16x128xf32>, vector<32x128xf32> -> vector<32x128xf32>
    %c0_11 = arith.constant 0 : index
    %c0_12 = arith.constant 0 : index
    %23 = vector.load %arg4[%c0_11, %c0_12] : memref<32x1xf32, #tpu.memory_space<vmem>>, vector<32x1xf32>
    %24 = vector.broadcast %23 : vector<32x1xf32> to vector<32x128xf32>
    %25 = arith.addf %22, %24 : vector<32x128xf32>
    %c0_13 = arith.constant 0 : index
    %c0_14 = arith.constant 0 : index
    %26 = vector.load %arg5[%c0_13, %c0_14] : memref<32x128xf32, #tpu.memory_space<vmem>>, vector<32x128xf32>
    tpu.vector_store %arg5[%c0_13, %c0_14], %25 {strides = array<i32>} : memref<32x128xf32, #tpu.memory_space<vmem>>, vector<32x128xf32>,
    return
  }
  func.func @transform_0(%arg0: i32) -> (i32, i32) {
    %c0_i32 = arith.constant 0 : i32
    %c0_i32_0 = arith.constant 0 : i32
    return %c0_i32, %arg0 : i32, i32
  }
  func.func @transform_1(%arg0: i32) -> (i32, i32) {
    %c0_i32 = arith.constant 0 : i32
    %c0_i32_0 = arith.constant 0 : i32
    %c0_i32_1 = arith.constant 0 : i32
    return %c0_i32, %c0_i32_0 : i32, i32
  }
  func.func @transform_2(%arg0: i32) -> (i32, i32) {
    %c0_i32 = arith.constant 0 : i32
    %c0_i32_0 = arith.constant 0 : i32
    %c0_i32_1 = arith.constant 0 : i32
    return %c0_i32, %c0_i32_0 : i32, i32
  }
  func.func @transform_3(%arg0: i32) -> (i32, i32) {
    %c0_i32 = arith.constant 0 : i32
    %c0_i32_0 = arith.constant 0 : i32
    %c0_i32_1 = arith.constant 0 : i32
    return %c0_i32, %c0_i32_0 : i32, i32
  }
  func.func @transform_4(%arg0: i32) -> (i32, i32) {
    %c0_i32 = arith.constant 0 : i32
    %c0_i32_0 = arith.constant 0 : i32
    return %c0_i32, %arg0 : i32, i32
  }
}

</mosaic_0001>

<llo_original>
// kernel: tpu_custom_call.1
$region0: #{tpu_custom_call.1}
  #allocation0 [shape = 'u32[]', space=smem, size = 0x4, offset = 0x4, fixed_abs, tag = 'smem constant byte address 0x4 - core index']
  #allocation1 [shape = 'u32[144,128]{1,0:T(1,128)}', space=vmem, size = 0x12000, scoped, tag = 'internal scratch']
  %s0 = inlined_call_operand.vmem [shape: f32[1,128], index: 0, kind: input, shape index: {}]
  %s1 = inlined_call_operand.vmem [shape: f32[16,1], index: 1, kind: input, shape index: {}]
  %s2 = inlined_call_operand.vmem [shape: f32[32,16], index: 2, kind: input, shape index: {}]
  %s3 = inlined_call_operand.vmem [shape: f32[32,1], index: 3, kind: input, shape index: {}]
  %s4 = inlined_call_operand.vmem [shape: f32[128,32], index: 4, kind: output, shape index: {}]
  %s5 = sld [smem:[#allocation0]]
  $region26: #{tpu_custom_call.1} parent=0
    _
  %s7 = ssub.s32 1, %s5
  %s8 = scalar_select 0, %s7, %s5
  // Predicated region
  $region2: #{tpu_custom_call.1} parent=0 // pred_check
    _
  $region3: #{tpu_custom_call.1} parent=0 // pred_check_branch
    %10 = sbr.rel (0) target = $region5
  $region4: #{tpu_custom_call.1} parent=0 // pred_region
    _
  $region5: #{tpu_custom_call.1} parent=0 // pred_fallthru
    _
  // Predicated region
  $region6: #{tpu_custom_call.1} parent=0 // pred_check
    _
  $region7: #{tpu_custom_call.1} parent=0 // pred_check_branch
    %12 = sbr.rel (0) target = $region9
  $region8: #{tpu_custom_call.1} parent=0 // pred_region
    _
  $region9: #{tpu_custom_call.1} parent=0 // pred_fallthru
    _
  // Predicated region
  $region10: #{tpu_custom_call.1} parent=0 // pred_check
    _
  $region11: #{tpu_custom_call.1} parent=0 // pred_check_branch
    %14 = sbr.rel (0) target = $region13
  $region12: #{tpu_custom_call.1} parent=0 // pred_region
    _
  $region13: #{tpu_custom_call.1} parent=0 // pred_fallthru
    _
  // Predicated region
  $region14: #{tpu_custom_call.1} parent=0 // pred_check
    _
  $region15: #{tpu_custom_call.1} parent=0 // pred_check_branch
    %16 = sbr.rel (0) target = $region17
  $region16: #{tpu_custom_call.1} parent=0 // pred_region
    _
  $region17: #{tpu_custom_call.1} parent=0 // pred_fallthru
    _
  %v17 = vld [vmem:[%s0] sm:$0x1]
  %v18 = vmul.f32 %v17, 1.442695
  %v19 = vld [vmem:[%s1] sm:$0xff]
  %v20 = vld [vmem:[%s1 + $0x8] sm:$0xff]
  %v21 = vmul.f32 %v19, 1.442695
  %v22 = vmul.f32 %v20, 1.442695
  %24 = vset.pattern.permute.xlu0 0
  %25 = vperm.xlu0 %24, %v21
  %v26 = vpop.permute.xlu0 %25
  %29 = vset.pattern.permute.xlu0 0
  %30 = vperm.xlu0 %29, %v22
  %v31 = vpop.permute.xlu0 %30
  %v34 = vlaneseq
  %v35 = vshrl.u32 %v34, 7
  %v36 = vsub.s32 0, %v35
  %v37 = vrot.slane %v18, %v36
  %v39 = vsub.f32 %v26, %v37
  %v40 = vsub.f32 %v31, %v37
  %v41 = vand.u32 2147483647, %v39
  %v42 = vand.u32 2147483647, %v40
  %v43 = vmul.f32 %v41, 1.6666666
  %v44 = vmul.f32 %v42, 1.6666666
  %v45 = vadd.f32 %v43, 2.236068
  %v46 = vadd.f32 %v44, 2.236068
  %v47 = vmul.f32 %v45, %v41
  %v48 = vmul.f32 %v46, %v42
  %v49 = vadd.f32 %v47, 1.0
  %v50 = vadd.f32 %v48, 1.0
  %v51 = vmul.f32 %v41, -2.236068
  %v52 = vmul.f32 %v42, -2.236068
  %v53 = vmul.f32 %v51, 1.442695
  %v54 = vpow.pop %v53
  %v55 = vmul.f32 %v52, 1.442695
  %v56 = vpow.pop %v55
  %v57 = vmul.f32 %v49, %v54
  %v58 = vmul.f32 %v50, %v56
  %v59 = vld [vmem:[%s2] sm:$0xff]
  %v60 = vld [vmem:[%s2 + $0x8] sm:$0xff]
  %v61 = vld [vmem:[%s2 + $0x10] sm:$0xff]
  %v62 = vld [vmem:[%s2 + $0x18] sm:$0xff]
  %v63 = vld [vmem:[%s3] sm:$0xff]
  %v64 = vld [vmem:[%s3 + $0x8] sm:$0xff]
  %v65 = vld [vmem:[%s3 + $0x10] sm:$0xff]
  %v66 = vld [vmem:[%s3 + $0x18] sm:$0xff]
  %68 = vset.pattern.permute.xlu0 0
  %69 = vperm.xlu0 %68, %v63
  %v70 = vpop.permute.xlu0 %69
  %73 = vset.pattern.permute.xlu0 0
  %74 = vperm.xlu0 %73, %v64
  %v75 = vpop.permute.xlu0 %74
  %78 = vset.pattern.permute.xlu0 0
  %79 = vperm.xlu0 %78, %v65
  %v80 = vpop.permute.xlu0 %79
  %83 = vset.pattern.permute.xlu0 0
  %84 = vperm.xlu0 %83, %v66
  %v85 = vpop.permute.xlu0 %84
  %vm87 = vcmask 130048
  %v89 = vsel %vm87, %v59, 0
  %v92 = vsel %vm87, %v60, 0
  %v95 = vsel %vm87, %v61, 0
  %v98 = vsel %vm87, %v62, 0
  %100 = vmatprep.subr.mxu0 0.0
  %101 = vmatpush1.msra.mxu0 0.0
  %102 = vmatprep.subr.mxu0 0.0
  %103 = vmatpush1.msra.mxu0 0.0
  %104 = vmatprep.subr.mxu0 0.0
  %105 = vmatpush1.msra.mxu0 0.0
  %106 = vmatprep.subr.mxu0 0.0
  %107 = vmatpush1.msra.mxu0 0.0
  %108 = vmatprep.subr.mxu0 0.0
  %109 = vmatpush1.msra.mxu0 0.0
  %110 = vmatprep.subr.mxu0 0.0
  %111 = vmatpush1.msra.mxu0 0.0
  %112 = vmatprep.subr.mxu0 0.0
  %113 = vmatpush1.msra.mxu0 0.0
  %114 = vmatprep.subr.mxu0 0.0
  %115 = vmatpush1.msra.mxu0 0.0
  %116 = vmatprep.subr.mxu0 0.0
  %117 = vmatpush1.msra.mxu0 0.0
  %118 = vmatprep.subr.mxu0 0.0
  %119 = vmatpush1.msra.mxu0 0.0
  %120 = vmatprep.subr.mxu0 0.0
  %121 = vmatpush1.msra.mxu0 0.0
  %122 = vmatprep.subr.mxu0 0.0
  %123 = vmatpush1.msra.mxu0 0.0
  %124 = vmatprep.subr.mxu0 0.0
  %125 = vmatpush1.msra.mxu0 0.0
  %126 = vmatprep.subr.mxu0 0.0
  %127 = vmatpush1.msra.mxu0 0.0
  %128 = vmatprep.subr.mxu0 0.0
  %v129 = vand.u32 %v58, 4294901760
  %130 = vmatpush1.msra.mxu0 %v129
  %131 = vmatprep.subr.mxu0 0.0
  %v132 = vand.u32 %v57, 4294901760
  %133 = vmatpush1.msra.mxu0 %v132
  %134 = vmatprep.subr.mxu0 0.0
  %135 = vmatpush2.msra.mxu0 0.0
  %136 = vmatprep.subr.mxu0 0.0
  %137 = vmatpush2.msra.mxu0 0.0
  %138 = vmatprep.subr.mxu0 0.0
  %139 = vmatpush2.msra.mxu0 0.0
  %140 = vmatprep.subr.mxu0 0.0
  %141 = vmatpush2.msra.mxu0 0.0
  %142 = vmatprep.subr.mxu0 0.0
  %143 = vmatpush2.msra.mxu0 0.0
  %144 = vmatprep.subr.mxu0 0.0
  %145 = vmatpush2.msra.mxu0 0.0
  %146 = vmatprep.subr.mxu0 0.0
  %147 = vmatpush2.msra.mxu0 0.0
  %148 = vmatprep.subr.mxu0 0.0
  %149 = vmatpush2.msra.mxu0 0.0
  %150 = vmatprep.subr.mxu0 0.0
  %151 = vmatpush2.msra.mxu0 0.0
  %152 = vmatprep.subr.mxu0 0.0
  %153 = vmatpush2.msra.mxu0 0.0
  %154 = vmatprep.subr.mxu0 0.0
  %155 = vmatpush2.msra.mxu0 0.0
  %156 = vmatprep.subr.mxu0 0.0
  %157 = vmatpush2.msra.mxu0 0.0
  %158 = vmatprep.subr.mxu0 0.0
  %159 = vmatpush2.msra.mxu0 0.0
  %160 = vmatprep.subr.mxu0 0.0
  %161 = vmatpush2.msra.mxu0 0.0
  %162 = vmatprep.subr.mxu0 0.0
  %163 = vmatpush2.msra.mxu0 0.0
  %164 = vmatprep.subr.mxu0 0.0
  %165 = vmatpush2.msra.mxu0 0.0
  %166 = vmatprep.mubr.f32.mxu0 0.0
  %v167 = vand.u32 %v89, 4294901760
  %v168 = vsub.f32 %v89, %v167
  %v169 = vand.u32 %v168, 4294901760
  %v170 = vsub.f32 %v168, %v169
  %v171 = vand.u32 %v170, 4294901760
  %172 = vmatmul.mubr.f32.gmra.mxu0 %v171
  %v173 = vpop.f32.mrf.mxu0
  %v174 = vadd.f32 %v70, %v173
  %v175 = vpop.f32.mrf.mxu0
  %176 = vmatprep.mubr.f32.mxu0 0.0
  %v177 = vand.u32 %v92, 4294901760
  %v178 = vsub.f32 %v92, %v177
  %v179 = vand.u32 %v178, 4294901760
  %v180 = vsub.f32 %v178, %v179
  %v181 = vand.u32 %v180, 4294901760
  %182 = vmatmul.mubr.f32.gmra.mxu0 %v181
  %v183 = vpop.f32.mrf.mxu0
  %v184 = vadd.f32 %v75, %v183
  %v185 = vpop.f32.mrf.mxu0
  %186 = vmatprep.mubr.f32.mxu0 0.0
  %v187 = vand.u32 %v95, 4294901760
  %v188 = vsub.f32 %v95, %v187
  %v189 = vand.u32 %v188, 4294901760
  %v190 = vsub.f32 %v188, %v189
  %v191 = vand.u32 %v190, 4294901760
  %192 = vmatmul.mubr.f32.gmra.mxu0 %v191
  %v193 = vpop.f32.mrf.mxu0
  %v194 = vadd.f32 %v80, %v193
  %v195 = vpop.f32.mrf.mxu0
  %196 = vmatprep.mubr.f32.mxu0 0.0
  %v197 = vand.u32 %v98, 4294901760
  %v198 = vsub.f32 %v98, %v197
  %v199 = vand.u32 %v198, 4294901760
  %v200 = vsub.f32 %v198, %v199
  %v201 = vand.u32 %v200, 4294901760
  %202 = vmatmul.mubr.f32.gmra.mxu0 %v201
  %v203 = vpop.f32.mrf.mxu0
  %v204 = vadd.f32 %v85, %v203
  %v205 = vpop.f32.mrf.mxu0
  %206 = vdwg.mxu0
  %207 = vmatprep.subr.mxu0 0.0
  %208 = vmatpush1.msra.mxu0 0.0
  %209 = vmatprep.subr.mxu0 0.0
  %210 = vmatpush1.msra.mxu0 0.0
  %211 = vmatprep.subr.mxu0 0.0
  %212 = vmatpush1.msra.mxu0 0.0
  %213 = vmatprep.subr.mxu0 0.0
  %214 = vmatpush1.msra.mxu0 0.0
  %215 = vmatprep.subr.mxu0 0.0
  %216 = vmatpush1.msra.mxu0 0.0
  %217 = vmatprep.subr.mxu0 0.0
  %218 = vmatpush1.msra.mxu0 0.0
  %219 = vmatprep.subr.mxu0 0.0
  %220 = vmatpush1.msra.mxu0 0.0
  %221 = vmatprep.subr.mxu0 0.0
  %222 = vmatpush1.msra.mxu0 0.0
  %223 = vmatprep.subr.mxu0 0.0
  %224 = vmatpush1.msra.mxu0 0.0
  %225 = vmatprep.subr.mxu0 0.0
  %226 = vmatpush1.msra.mxu0 0.0
  %227 = vmatprep.subr.mxu0 0.0
  %228 = vmatpush1.msra.mxu0 0.0
  %229 = vmatprep.subr.mxu0 0.0
  %230 = vmatpush1.msra.mxu0 0.0
  %231 = vmatprep.subr.mxu0 0.0
  %232 = vmatpush1.msra.mxu0 0.0
  %233 = vmatprep.subr.mxu0 0.0
  %234 = vmatpush1.msra.mxu0 0.0
  %235 = vmatprep.subr.mxu0 0.0
  %v236 = vand.u32 %v58, 4294901760
  %v237 = vsub.f32 %v58, %v236
  %v238 = vand.u32 %v237, 4294901760
  %v239 = vsub.f32 %v237, %v238
  %v240 = vand.u32 %v239, 4294901760
  %241 = vmatpush1.msra.mxu0 %v240
  %242 = vmatprep.subr.mxu0 0.0
  %v243 = vand.u32 %v57, 4294901760
  %v244 = vsub.f32 %v57, %v243
  %v245 = vand.u32 %v244, 4294901760
  %v246 = vsub.f32 %v244, %v245
  %v247 = vand.u32 %v246, 4294901760
  %248 = vmatpush1.msra.mxu0 %v247
  %249 = vmatprep.subr.mxu0 0.0
  %250 = vmatpush2.msra.mxu0 0.0
  %251 = vmatprep.subr.mxu0 0.0
  %252 = vmatpush2.msra.mxu0 0.0
  %253 = vmatprep.subr.mxu0 0.0
  %254 = vmatpush2.msra.mxu0 0.0
  %255 = vmatprep.subr.mxu0 0.0
  %256 = vmatpush2.msra.mxu0 0.0
  %257 = vmatprep.subr.mxu0 0.0
  %258 = vmatpush2.msra.mxu0 0.0
  %259 = vmatprep.subr.mxu0 0.0
  %260 = vmatpush2.msra.mxu0 0.0
  %261 = vmatprep.subr.mxu0 0.0
  %262 = vmatpush2.msra.mxu0 0.0
  %263 = vmatprep.subr.mxu0 0.0
  %264 = vmatpush2.msra.mxu0 0.0
  %265 = vmatprep.subr.mxu0 0.0
  %266 = vmatpush2.msra.mxu0 0.0
  %267 = vmatprep.subr.mxu0 0.0
  %268 = vmatpush2.msra.mxu0 0.0
  %269 = vmatprep.subr.mxu0 0.0
  %270 = vmatpush2.msra.mxu0 0.0
  %271 = vmatprep.subr.mxu0 0.0
  %272 = vmatpush2.msra.mxu0 0.0
  %273 = vmatprep.subr.mxu0 0.0
  %274 = vmatpush2.msra.mxu0 0.0
  %275 = vmatprep.subr.mxu0 0.0
  %276 = vmatpush2.msra.mxu0 0.0
  %277 = vmatprep.subr.mxu0 0.0
  %278 = vmatpush2.msra.mxu0 0.0
  %279 = vmatprep.subr.mxu0 0.0
  %280 = vmatpush2.msra.mxu0 0.0
  %281 = vmatprep.mubr.f32.mxu0 0.0
  %v282 = vand.u32 %v89, 4294901760
  %283 = vmatmul.mubr.f32.gmra.mxu0 %v282
  %v284 = vpop.f32.mrf.mxu0
  %v285 = vadd.f32 %v174, %v284
  %v286 = vpop.f32.mrf.mxu0
  %287 = vmatprep.mubr.f32.mxu0 0.0
  %v288 = vand.u32 %v92, 4294901760
  %289 = vmatmul.mubr.f32.gmra.mxu0 %v288
  %v290 = vpop.f32.mrf.mxu0
  %v291 = vadd.f32 %v184, %v290
  %v292 = vpop.f32.mrf.mxu0
  %293 = vmatprep.mubr.f32.mxu0 0.0
  %v294 = vand.u32 %v95, 4294901760
  %295 = vmatmul.mubr.f32.gmra.mxu0 %v294
  %v296 = vpop.f32.mrf.mxu0
  %v297 = vadd.f32 %v194, %v296
  %v298 = vpop.f32.mrf.mxu0
  %299 = vmatprep.mubr.f32.mxu0 0.0
  %v300 = vand.u32 %v98, 4294901760
  %301 = vmatmul.mubr.f32.gmra.mxu0 %v300
  %v302 = vpop.f32.mrf.mxu0
  %v303 = vadd.f32 %v204, %v302
  %v304 = vpop.f32.mrf.mxu0
  %305 = vdwg.mxu0
  %306 = vmatprep.subr.mxu0 0.0
  %307 = vmatpush1.msra.mxu0 0.0
  %308 = vmatprep.subr.mxu0 0.0
  %309 = vmatpush1.msra.mxu0 0.0
  %310 = vmatprep.subr.mxu0 0.0
  %311 = vmatpush1.msra.mxu0 0.0
  %312 = vmatprep.subr.mxu0 0.0
  %313 = vmatpush1.msra.mxu0 0.0
  %314 = vmatprep.subr.mxu0 0.0
  %315 = vmatpush1.msra.mxu0 0.0
  %316 = vmatprep.subr.mxu0 0.0
  %317 = vmatpush1.msra.mxu0 0.0
  %318 = vmatprep.subr.mxu0 0.0
  %319 = vmatpush1.msra.mxu0 0.0
  %320 = vmatprep.subr.mxu0 0.0
  %321 = vmatpush1.msra.mxu0 0.0
  %322 = vmatprep.subr.mxu0 0.0
  %323 = vmatpush1.msra.mxu0 0.0
  %324 = vmatprep.subr.mxu0 0.0
  %325 = vmatpush1.msra.mxu0 0.0
  %326 = vmatprep.subr.mxu0 0.0
  %327 = vmatpush1.msra.mxu0 0.0
  %328 = vmatprep.subr.mxu0 0.0
  %329 = vmatpush1.msra.mxu0 0.0
  %330 = vmatprep.subr.mxu0 0.0
  %331 = vmatpush1.msra.mxu0 0.0
  %332 = vmatprep.subr.mxu0 0.0
  %333 = vmatpush1.msra.mxu0 0.0
  %334 = vmatprep.subr.mxu0 0.0
  %v335 = vand.u32 %v58, 4294901760
  %v336 = vsub.f32 %v58, %v335
  %337 = vmatpush1.msra.mxu0 %v336
  %338 = vmatprep.subr.mxu0 0.0
  %v339 = vand.u32 %v57, 4294901760
  %v340 = vsub.f32 %v57, %v339
  %341 = vmatpush1.msra.mxu0 %v340
  %342 = vmatprep.subr.mxu0 0.0
  %343 = vmatpush2.msra.mxu0 0.0
  %344 = vmatprep.subr.mxu0 0.0
  %345 = vmatpush2.msra.mxu0 0.0
  %346 = vmatprep.subr.mxu0 0.0
  %347 = vmatpush2.msra.mxu0 0.0
  %348 = vmatprep.subr.mxu0 0.0
  %349 = vmatpush2.msra.mxu0 0.0
  %350 = vmatprep.subr.mxu0 0.0
  %351 = vmatpush2.msra.mxu0 0.0
  %352 = vmatprep.subr.mxu0 0.0
  %353 = vmatpush2.msra.mxu0 0.0
  %354 = vmatprep.subr.mxu0 0.0
  %355 = vmatpush2.msra.mxu0 0.0
  %356 = vmatprep.subr.mxu0 0.0
  %357 = vmatpush2.msra.mxu0 0.0
  %358 = vmatprep.subr.mxu0 0.0
  %359 = vmatpush2.msra.mxu0 0.0
  %360 = vmatprep.subr.mxu0 0.0
  %361 = vmatpush2.msra.mxu0 0.0
  %362 = vmatprep.subr.mxu0 0.0
  %363 = vmatpush2.msra.mxu0 0.0
  %364 = vmatprep.subr.mxu0 0.0
  %365 = vmatpush2.msra.mxu0 0.0
  %366 = vmatprep.subr.mxu0 0.0
  %367 = vmatpush2.msra.mxu0 0.0
  %368 = vmatprep.subr.mxu0 0.0
  %369 = vmatpush2.msra.mxu0 0.0
  %370 = vmatprep.subr.mxu0 0.0
  %371 = vmatpush2.msra.mxu0 0.0
  %372 = vmatprep.subr.mxu0 0.0
  %373 = vmatpush2.msra.mxu0 0.0
  %374 = vmatprep.mubr.f32.mxu0 0.0
  %v375 = vand.u32 %v89, 4294901760
  %v376 = vsub.f32 %v89, %v375
  %377 = vmatmul.mubr.f32.gmra.mxu0 %v376
  %v378 = vpop.f32.mrf.mxu0
  %v379 = vadd.f32 %v285, %v378
  %v380 = vpop.f32.mrf.mxu0
  %381 = vmatprep.mubr.f32.mxu0 0.0
  %v382 = vand.u32 %v92, 4294901760
  %v383 = vsub.f32 %v92, %v382
  %384 = vmatmul.mubr.f32.gmra.mxu0 %v383
  %v385 = vpop.f32.mrf.mxu0
  %v386 = vadd.f32 %v291, %v385
  %v387 = vpop.f32.mrf.mxu0
  %388 = vmatprep.mubr.f32.mxu0 0.0
  %v389 = vand.u32 %v95, 4294901760
  %v390 = vsub.f32 %v95, %v389
  %391 = vmatmul.mubr.f32.gmra.mxu0 %v390
  %v392 = vpop.f32.mrf.mxu0
  %v393 = vadd.f32 %v297, %v392
  %v394 = vpop.f32.mrf.mxu0
  %395 = vmatprep.mubr.f32.mxu0 0.0
  %v396 = vand.u32 %v98, 4294901760
  %v397 = vsub.f32 %v98, %v396
  %398 = vmatmul.mubr.f32.gmra.mxu0 %v397
  %v399 = vpop.f32.mrf.mxu0
  %v400 = vadd.f32 %v303, %v399
  %v401 = vpop.f32.mrf.mxu0
  %402 = vdwg.mxu0
  %403 = vmatprep.subr.mxu0 0.0
  %404 = vmatpush1.msra.mxu0 0.0
  %405 = vmatprep.subr.mxu0 0.0
  %406 = vmatpush1.msra.mxu0 0.0
  %407 = vmatprep.subr.mxu0 0.0
  %408 = vmatpush1.msra.mxu0 0.0
  %409 = vmatprep.subr.mxu0 0.0
  %410 = vmatpush1.msra.mxu0 0.0
  %411 = vmatprep.subr.mxu0 0.0
  %412 = vmatpush1.msra.mxu0 0.0
  %413 = vmatprep.subr.mxu0 0.0
  %414 = vmatpush1.msra.mxu0 0.0
  %415 = vmatprep.subr.mxu0 0.0
  %416 = vmatpush1.msra.mxu0 0.0
  %417 = vmatprep.subr.mxu0 0.0
  %418 = vmatpush1.msra.mxu0 0.0
  %419 = vmatprep.subr.mxu0 0.0
  %420 = vmatpush1.msra.mxu0 0.0
  %421 = vmatprep.subr.mxu0 0.0
  %422 = vmatpush1.msra.mxu0 0.0
  %423 = vmatprep.subr.mxu0 0.0
  %424 = vmatpush1.msra.mxu0 0.0
  %425 = vmatprep.subr.mxu0 0.0
  %426 = vmatpush1.msra.mxu0 0.0
  %427 = vmatprep.subr.mxu0 0.0
  %428 = vmatpush1.msra.mxu0 0.0
  %429 = vmatprep.subr.mxu0 0.0
  %430 = vmatpush1.msra.mxu0 0.0
  %431 = vmatprep.subr.mxu0 0.0
  %v432 = vand.u32 %v58, 4294901760
  %433 = vmatpush1.msra.mxu0 %v432
  %434 = vmatprep.subr.mxu0 0.0
  %v435 = vand.u32 %v57, 4294901760
  %436 = vmatpush1.msra.mxu0 %v435
  %437 = vmatprep.subr.mxu0 0.0
  %438 = vmatpush2.msra.mxu0 0.0
  %439 = vmatprep.subr.mxu0 0.0
  %440 = vmatpush2.msra.mxu0 0.0
  %441 = vmatprep.subr.mxu0 0.0
  %442 = vmatpush2.msra.mxu0 0.0
  %443 = vmatprep.subr.mxu0 0.0
  %444 = vmatpush2.msra.mxu0 0.0
  %445 = vmatprep.subr.mxu0 0.0
  %446 = vmatpush2.msra.mxu0 0.0
  %447 = vmatprep.subr.mxu0 0.0
  %448 = vmatpush2.msra.mxu0 0.0
  %449 = vmatprep.subr.mxu0 0.0
  %450 = vmatpush2.msra.mxu0 0.0
  %451 = vmatprep.subr.mxu0 0.0
  %452 = vmatpush2.msra.mxu0 0.0
  %453 = vmatprep.subr.mxu0 0.0
  %454 = vmatpush2.msra.mxu0 0.0
  %455 = vmatprep.subr.mxu0 0.0
  %456 = vmatpush2.msra.mxu0 0.0
  %457 = vmatprep.subr.mxu0 0.0
  %458 = vmatpush2.msra.mxu0 0.0
  %459 = vmatprep.subr.mxu0 0.0
  %460 = vmatpush2.msra.mxu0 0.0
  %461 = vmatprep.subr.mxu0 0.0
  %462 = vmatpush2.msra.mxu0 0.0
  %463 = vmatprep.subr.mxu0 0.0
  %464 = vmatpush2.msra.mxu0 0.0
  %465 = vmatprep.subr.mxu0 0.0
  %466 = vmatpush2.msra.mxu0 0.0
  %467 = vmatprep.subr.mxu0 0.0
  %468 = vmatpush2.msra.mxu0 0.0
  %469 = vmatprep.mubr.f32.mxu0 0.0
  %v470 = vand.u32 %v89, 4294901760
  %v471 = vsub.f32 %v89, %v470
  %v472 = vand.u32 %v471, 4294901760
  %473 = vmatmul.mubr.f32.gmra.mxu0 %v472
  %v474 = vpop.f32.mrf.mxu0
  %v475 = vadd.f32 %v379, %v474
  %v476 = vpop.f32.mrf.mxu0
  %477 = vmatprep.mubr.f32.mxu0 0.0
  %v478 = vand.u32 %v92, 4294901760
  %v479 = vsub.f32 %v92, %v478
  %v480 = vand.u32 %v479, 4294901760
  %481 = vmatmul.mubr.f32.gmra.mxu0 %v480
  %v482 = vpop.f32.mrf.mxu0
  %v483 = vadd.f32 %v386, %v482
  %v484 = vpop.f32.mrf.mxu0
  %485 = vmatprep.mubr.f32.mxu0 0.0
  %v486 = vand.u32 %v95, 4294901760
  %v487 = vsub.f32 %v95, %v486
  %v488 = vand.u32 %v487, 4294901760
  %489 = vmatmul.mubr.f32.gmra.mxu0 %v488
  %v490 = vpop.f32.mrf.mxu0
  %v491 = vadd.f32 %v393, %v490
  %v492 = vpop.f32.mrf.mxu0
  %493 = vmatprep.mubr.f32.mxu0 0.0
  %v494 = vand.u32 %v98, 4294901760
  %v495 = vsub.f32 %v98, %v494
  %v496 = vand.u32 %v495, 4294901760
  %497 = vmatmul.mubr.f32.gmra.mxu0 %v496
  %v498 = vpop.f32.mrf.mxu0
  %v499 = vadd.f32 %v400, %v498
  %v500 = vpop.f32.mrf.mxu0
  %501 = vdwg.mxu0
  %502 = vmatprep.subr.mxu0 0.0
  %503 = vmatpush1.msra.mxu0 0.0
  %504 = vmatprep.subr.mxu0 0.0
  %505 = vmatpush1.msra.mxu0 0.0
  %506 = vmatprep.subr.mxu0 0.0
  %507 = vmatpush1.msra.mxu0 0.0
  %508 = vmatprep.subr.mxu0 0.0
  %509 = vmatpush1.msra.mxu0 0.0
  %510 = vmatprep.subr.mxu0 0.0
  %511 = vmatpush1.msra.mxu0 0.0
  %512 = vmatprep.subr.mxu0 0.0
  %513 = vmatpush1.msra.mxu0 0.0
  %514 = vmatprep.subr.mxu0 0.0
  %515 = vmatpush1.msra.mxu0 0.0
  %516 = vmatprep.subr.mxu0 0.0
  %517 = vmatpush1.msra.mxu0 0.0
  %518 = vmatprep.subr.mxu0 0.0
  %519 = vmatpush1.msra.mxu0 0.0
  %520 = vmatprep.subr.mxu0 0.0
  %521 = vmatpush1.msra.mxu0 0.0
  %522 = vmatprep.subr.mxu0 0.0
  %523 = vmatpush1.msra.mxu0 0.0
  %524 = vmatprep.subr.mxu0 0.0
  %525 = vmatpush1.msra.mxu0 0.0
  %526 = vmatprep.subr.mxu0 0.0
  %527 = vmatpush1.msra.mxu0 0.0
  %528 = vmatprep.subr.mxu0 0.0
  %529 = vmatpush1.msra.mxu0 0.0
  %530 = vmatprep.subr.mxu0 0.0
  %v531 = vand.u32 %v58, 4294901760
  %v532 = vsub.f32 %v58, %v531
  %v533 = vand.u32 %v532, 4294901760
  %534 = vmatpush1.msra.mxu0 %v533
  %535 = vmatprep.subr.mxu0 0.0
  %v536 = vand.u32 %v57, 4294901760
  %v537 = vsub.f32 %v57, %v536
  %v538 = vand.u32 %v537, 4294901760
  %539 = vmatpush1.msra.mxu0 %v538
  %540 = vmatprep.subr.mxu0 0.0
  %541 = vmatpush2.msra.mxu0 0.0
  %542 = vmatprep.subr.mxu0 0.0
  %543 = vmatpush2.msra.mxu0 0.0
  %544 = vmatprep.subr.mxu0 0.0
  %545 = vmatpush2.msra.mxu0 0.0
  %546 = vmatprep.subr.mxu0 0.0
  %547 = vmatpush2.msra.mxu0 0.0
  %548 = vmatprep.subr.mxu0 0.0
  %549 = vmatpush2.msra.mxu0 0.0
  %550 = vmatprep.subr.mxu0 0.0
  %551 = vmatpush2.msra.mxu0 0.0
  %552 = vmatprep.subr.mxu0 0.0
  %553 = vmatpush2.msra.mxu0 0.0
  %554 = vmatprep.subr.mxu0 0.0
  %555 = vmatpush2.msra.mxu0 0.0
  %556 = vmatprep.subr.mxu0 0.0
  %557 = vmatpush2.msra.mxu0 0.0
  %558 = vmatprep.subr.mxu0 0.0
  %559 = vmatpush2.msra.mxu0 0.0
  %560 = vmatprep.subr.mxu0 0.0
  %561 = vmatpush2.msra.mxu0 0.0
  %562 = vmatprep.subr.mxu0 0.0
  %563 = vmatpush2.msra.mxu0 0.0
  %564 = vmatprep.subr.mxu0 0.0
  %565 = vmatpush2.msra.mxu0 0.0
  %566 = vmatprep.subr.mxu0 0.0
  %567 = vmatpush2.msra.mxu0 0.0
  %568 = vmatprep.subr.mxu0 0.0
  %569 = vmatpush2.msra.mxu0 0.0
  %570 = vmatprep.subr.mxu0 0.0
  %571 = vmatpush2.msra.mxu0 0.0
  %572 = vmatprep.mubr.f32.mxu0 0.0
  %v573 = vand.u32 %v89, 4294901760
  %574 = vmatmul.mubr.f32.gmra.mxu0 %v573
  %v575 = vpop.f32.mrf.mxu0
  %v576 = vadd.f32 %v475, %v575
  %v577 = vpop.f32.mrf.mxu0
  %578 = vmatprep.mubr.f32.mxu0 0.0
  %v579 = vand.u32 %v92, 4294901760
  %580 = vmatmul.mubr.f32.gmra.mxu0 %v579
  %v581 = vpop.f32.mrf.mxu0
  %v582 = vadd.f32 %v483, %v581
  %v583 = vpop.f32.mrf.mxu0
  %584 = vmatprep.mubr.f32.mxu0 0.0
  %v585 = vand.u32 %v95, 4294901760
  %586 = vmatmul.mubr.f32.gmra.mxu0 %v585
  %v587 = vpop.f32.mrf.mxu0
  %v588 = vadd.f32 %v491, %v587
  %v589 = vpop.f32.mrf.mxu0
  %590 = vmatprep.mubr.f32.mxu0 0.0
  %v591 = vand.u32 %v98, 4294901760
  %592 = vmatmul.mubr.f32.gmra.mxu0 %v591
  %v593 = vpop.f32.mrf.mxu0
  %v594 = vadd.f32 %v499, %v593
  %v595 = vpop.f32.mrf.mxu0
  %596 = vdwg.mxu0
  %597 = vmatprep.subr.mxu0 0.0
  %598 = vmatpush1.msra.mxu0 0.0
  %599 = vmatprep.subr.mxu0 0.0
  %600 = vmatpush1.msra.mxu0 0.0
  %601 = vmatprep.subr.mxu0 0.0
  %602 = vmatpush1.msra.mxu0 0.0
  %603 = vmatprep.subr.mxu0 0.0
  %604 = vmatpush1.msra.mxu0 0.0
  %605 = vmatprep.subr.mxu0 0.0
  %606 = vmatpush1.msra.mxu0 0.0
  %607 = vmatprep.subr.mxu0 0.0
  %608 = vmatpush1.msra.mxu0 0.0
  %609 = vmatprep.subr.mxu0 0.0
  %610 = vmatpush1.msra.mxu0 0.0
  %611 = vmatprep.subr.mxu0 0.0
  %612 = vmatpush1.msra.mxu0 0.0
  %613 = vmatprep.subr.mxu0 0.0
  %614 = vmatpush1.msra.mxu0 0.0
  %615 = vmatprep.subr.mxu0 0.0
  %616 = vmatpush1.msra.mxu0 0.0
  %617 = vmatprep.subr.mxu0 0.0
  %618 = vmatpush1.msra.mxu0 0.0
  %619 = vmatprep.subr.mxu0 0.0
  %620 = vmatpush1.msra.mxu0 0.0
  %621 = vmatprep.subr.mxu0 0.0
  %622 = vmatpush1.msra.mxu0 0.0
  %623 = vmatprep.subr.mxu0 0.0
  %624 = vmatpush1.msra.mxu0 0.0
  %625 = vmatprep.subr.mxu0 0.0
  %v626 = vand.u32 %v58, 4294901760
  %627 = vmatpush1.msra.mxu0 %v626
  %628 = vmatprep.subr.mxu0 0.0
  %v629 = vand.u32 %v57, 4294901760
  %630 = vmatpush1.msra.mxu0 %v629
  %631 = vmatprep.subr.mxu0 0.0
  %632 = vmatpush2.msra.mxu0 0.0
  %633 = vmatprep.subr.mxu0 0.0
  %634 = vmatpush2.msra.mxu0 0.0
  %635 = vmatprep.subr.mxu0 0.0
  %636 = vmatpush2.msra.mxu0 0.0
  %637 = vmatprep.subr.mxu0 0.0
  %638 = vmatpush2.msra.mxu0 0.0
  %639 = vmatprep.subr.mxu0 0.0
  %640 = vmatpush2.msra.mxu0 0.0
  %641 = vmatprep.subr.mxu0 0.0
  %642 = vmatpush2.msra.mxu0 0.0
  %643 = vmatprep.subr.mxu0 0.0
  %644 = vmatpush2.msra.mxu0 0.0
  %645 = vmatprep.subr.mxu0 0.0
  %646 = vmatpush2.msra.mxu0 0.0
  %647 = vmatprep.subr.mxu0 0.0
  %648 = vmatpush2.msra.mxu0 0.0
  %649 = vmatprep.subr.mxu0 0.0
  %650 = vmatpush2.msra.mxu0 0.0
  %651 = vmatprep.subr.mxu0 0.0
  %652 = vmatpush2.msra.mxu0 0.0
  %653 = vmatprep.subr.mxu0 0.0
  %654 = vmatpush2.msra.mxu0 0.0
  %655 = vmatprep.subr.mxu0 0.0
  %656 = vmatpush2.msra.mxu0 0.0
  %657 = vmatprep.subr.mxu0 0.0
  %658 = vmatpush2.msra.mxu0 0.0
  %659 = vmatprep.subr.mxu0 0.0
  %660 = vmatpush2.msra.mxu0 0.0
  %661 = vmatprep.subr.mxu0 0.0
  %662 = vmatpush2.msra.mxu0 0.0
  %663 = vmatprep.mubr.f32.mxu0 0.0
  %v664 = vand.u32 %v89, 4294901760
  %665 = vmatmul.mubr.f32.gmra.mxu0 %v664
  %v666 = vpop.f32.mrf.mxu0
  %v667 = vadd.f32 %v576, %v666
  %v668 = vpop.f32.mrf.mxu0
  %669 = vmatprep.mubr.f32.mxu0 0.0
  %v670 = vand.u32 %v92, 4294901760
  %671 = vmatmul.mubr.f32.gmra.mxu0 %v670
  %v672 = vpop.f32.mrf.mxu0
  %v673 = vadd.f32 %v582, %v672
  %v674 = vpop.f32.mrf.mxu0
  %675 = vmatprep.mubr.f32.mxu0 0.0
  %v676 = vand.u32 %v95, 4294901760
  %677 = vmatmul.mubr.f32.gmra.mxu0 %v676
  %v678 = vpop.f32.mrf.mxu0
  %v679 = vadd.f32 %v588, %v678
  %v680 = vpop.f32.mrf.mxu0
  %681 = vmatprep.mubr.f32.mxu0 0.0
  %v682 = vand.u32 %v98, 4294901760
  %683 = vmatmul.mubr.f32.gmra.mxu0 %v682
  %v684 = vpop.f32.mrf.mxu0
  %v685 = vadd.f32 %v594, %v684
  %v686 = vpop.f32.mrf.mxu0
  %687 = vdwg.mxu0
  %688 = vxpose.xlu0.b32.start [1/16] %v667, 128
  %689 = vxpose.xlu0.b32.cont [2/16] %v673, 128
  %690 = vxpose.xlu0.b32.cont [3/16] %v679, 128
  %691 = vxpose.xlu0.b32.cont [4/16] %v685, 128
  %692 = vxpose.xlu0.b32.cont [5/16] 0.0, 128
  %693 = vxpose.xlu0.b32.cont [6/16] 0.0, 128
  %694 = vxpose.xlu0.b32.cont [7/16] 0.0, 128
  %695 = vxpose.xlu0.b32.cont [8/16] 0.0, 128
  %696 = vxpose.xlu0.b32.cont [9/16] 0.0, 128
  %697 = vxpose.xlu0.b32.cont [10/16] 0.0, 128
  %698 = vxpose.xlu0.b32.cont [11/16] 0.0, 128
  %699 = vxpose.xlu0.b32.cont [12/16] 0.0, 128
  %700 = vxpose.xlu0.b32.cont [13/16] 0.0, 128
  %701 = vxpose.xlu0.b32.cont [14/16] 0.0, 128
  %702 = vxpose.xlu0.b32.cont [15/16] 0.0, 128
  %703 = vxpose.xlu0.b32.end [16/16] 0.0, 128
  %v704 = vpop.trf.xlu0
  %v705 = vpop.trf.xlu0
  %v706 = vpop.trf.xlu0
  %v707 = vpop.trf.xlu0
  %v708 = vpop.trf.xlu0
  %v709 = vpop.trf.xlu0
  %v710 = vpop.trf.xlu0
  %v711 = vpop.trf.xlu0
  %v712 = vpop.trf.xlu0
  %v713 = vpop.trf.xlu0
  %v714 = vpop.trf.xlu0
  %v715 = vpop.trf.xlu0
  %v716 = vpop.trf.xlu0
  %v717 = vpop.trf.xlu0
  %v718 = vpop.trf.xlu0
  %v719 = vpop.trf.xlu0
  %vm720 = vcmask 261120
  %721 = vst.msk [vmem:[%s4] sm:$0xff] %vm720, %v704
  %722 = vst.msk [vmem:[%s4 + $0x8] sm:$0xff] %vm720, %v705
  %723 = vst.msk [vmem:[%s4 + $0x10] sm:$0xff] %vm720, %v706
  %724 = vst.msk [vmem:[%s4 + $0x18] sm:$0xff] %vm720, %v707
  %725 = vst.msk [vmem:[%s4 + $0x20] sm:$0xff] %vm720, %v708
  %726 = vst.msk [vmem:[%s4 + $0x28] sm:$0xff] %vm720, %v709
  %727 = vst.msk [vmem:[%s4 + $0x30] sm:$0xff] %vm720, %v710
  %728 = vst.msk [vmem:[%s4 + $0x38] sm:$0xff] %vm720, %v711
  %729 = vst.msk [vmem:[%s4 + $0x40] sm:$0xff] %vm720, %v712
  %730 = vst.msk [vmem:[%s4 + $0x48] sm:$0xff] %vm720, %v713
  %731 = vst.msk [vmem:[%s4 + $0x50] sm:$0xff] %vm720, %v714
  %732 = vst.msk [vmem:[%s4 + $0x58] sm:$0xff] %vm720, %v715
  %733 = vst.msk [vmem:[%s4 + $0x60] sm:$0xff] %vm720, %v716
  %734 = vst.msk [vmem:[%s4 + $0x68] sm:$0xff] %vm720, %v717
  %735 = vst.msk [vmem:[%s4 + $0x70] sm:$0xff] %vm720, %v718
  %736 = vst.msk [vmem:[%s4 + $0x78] sm:$0xff] %vm720, %v719
  // Predicated region
  $region18: #{tpu_custom_call.1} parent=0 // pred_check
    _
  $region19: #{tpu_custom_call.1} parent=0 // pred_check_branch
    %738 = sbr.rel (0) target = $region21
  $region20: #{tpu_custom_call.1} parent=0 // pred_region
    _
  $region21: #{tpu_custom_call.1} parent=0 // pred_fallthru
    _
  // Predicated region
  $region22: #{tpu_custom_call.1} parent=0 // pred_check
    _
  $region23: #{tpu_custom_call.1} parent=0 // pred_check_branch
    %740 = sbr.rel (0) target = $region25
  $region24: #{tpu_custom_call.1} parent=0 // pred_region
    _
  $region25: #{tpu_custom_call.1} parent=0 // pred_fallthru
    _

// kernel: tpu_custom_call.1
$region0: #{tpu_custom_call.1}
  #allocation0 [shape = 'u32[]', space=smem, size = 0x4, offset = 0x4, fixed_abs, tag = 'smem constant byte address 0x4 - core index']
  #allocation1 [shape = 'u32[144,128]{1,0:T(1,128)}', space=vmem, size = 0x12000, scoped, tag = 'internal scratch']
  %s0 = inlined_call_operand.vmem [shape: f32[1,128], index: 0, kind: input, shape index: {}]
  %s1 = inlined_call_operand.vmem [shape: f32[16,1], index: 1, kind: input, shape index: {}]
  %s2 = inlined_call_operand.vmem [shape: f32[32,16], index: 2, kind: input, shape index: {}]
  %s3 = inlined_call_operand.vmem [shape: f32[32,1], index: 3, kind: input, shape index: {}]
  %s4 = inlined_call_operand.hbm [shape: f32[32,128], index: 4, kind: output, shape index: {}]
  %s5 = sld [smem:[#allocation0]]
  $region26: #{tpu_custom_call.1} parent=0
    _
  %s7 = ssub.s32 1, %s5
  %s8 = scalar_select 0, %s7, %s5
  $region1: #{tpu_custom_call.1} parent=0
    #allocation2 [shape = 'u8[16384]{0}', space=vmem, size = 0x4000, scoped, tag = 'output window, operand 0, single buffered']
    #allocation3 [shape = 's32[1]{0}', space=sflag, size = 0x4, scoped, tag = 'scoped memory for tpu_custom_call.1']
    %9 = vsyncpa [#allocation3], 0
    // Predicated region
    $region2: #{tpu_custom_call.1} parent=1 // pred_check
      _
    $region3: #{tpu_custom_call.1} parent=1 // pred_check_branch
      %11 = sbr.rel (0) target = $region5
    $region4: #{tpu_custom_call.1} parent=1 // pred_region
      _
    $region5: #{tpu_custom_call.1} parent=1 // pred_fallthru
      _
    // Predicated region
    $region6: #{tpu_custom_call.1} parent=1 // pred_check
      _
    $region7: #{tpu_custom_call.1} parent=1 // pred_check_branch
      %13 = sbr.rel (0) target = $region9
    $region8: #{tpu_custom_call.1} parent=1 // pred_region
      _
    $region9: #{tpu_custom_call.1} parent=1 // pred_fallthru
      _
    // Predicated region
    $region10: #{tpu_custom_call.1} parent=1 // pred_check
      _
    $region11: #{tpu_custom_call.1} parent=1 // pred_check_branch
      %15 = sbr.rel (0) target = $region13
    $region12: #{tpu_custom_call.1} parent=1 // pred_region
      _
    $region13: #{tpu_custom_call.1} parent=1 // pred_fallthru
      _
    // Predicated region
    $region14: #{tpu_custom_call.1} parent=1 // pred_check
      _
    $region15: #{tpu_custom_call.1} parent=1 // pred_check_branch
      %17 = sbr.rel (0) target = $region17
    $region16: #{tpu_custom_call.1} parent=1 // pred_region
      _
    $region17: #{tpu_custom_call.1} parent=1 // pred_fallthru
      _
    %v18 = vld [vmem:[%s0] sm:$0x1]
    %v19 = vmul.f32 %v18, 1.442695
    %v20 = vld [vmem:[%s1] sm:$0xff]
    %v21 = vld [vmem:[%s1 + $0x8] sm:$0xff]
    %v22 = vmul.f32 %v20, 1.442695
    %v23 = vmul.f32 %v21, 1.442695
    %25 = vset.pattern.permute.xlu0 0
    %26 = vperm.xlu0 %25, %v22
    %v27 = vpop.permute.xlu0 %26
    %30 = vset.pattern.permute.xlu0 0
    %31 = vperm.xlu0 %30, %v23
    %v32 = vpop.permute.xlu0 %31
    %v35 = vlaneseq
    %v36 = vshrl.u32 %v35, 7
    %v37 = vsub.s32 0, %v36
    %v38 = vrot.slane %v19, %v37
    %v40 = vsub.f32 %v27, %v38
    %v41 = vsub.f32 %v32, %v38
    %v42 = vand.u32 2147483647, %v40
    %v43 = vand.u32 2147483647, %v41
    %v44 = vmul.f32 %v42, 1.6666666
    %v45 = vmul.f32 %v43, 1.6666666
    %v46 = vadd.f32 %v44, 2.236068
    %v47 = vadd.f32 %v45, 2.236068
    %v48 = vmul.f32 %v46, %v42
    %v49 = vmul.f32 %v47, %v43
    %v50 = vadd.f32 %v48, 1.0
    %v51 = vadd.f32 %v49, 1.0
    %v52 = vmul.f32 %v42, -2.236068
    %v53 = vmul.f32 %v43, -2.236068
    %v54 = vmul.f32 %v52, 1.442695
    %v55 = vpow.pop %v54
    %v56 = vmul.f32 %v53, 1.442695
    %v57 = vpow.pop %v56
    %v58 = vmul.f32 %v50, %v55
    %v59 = vmul.f32 %v51, %v57
    %v60 = vld [vmem:[%s2] sm:$0xff]
    %v61 = vld [vmem:[%s2 + $0x8] sm:$0xff]
    %v62 = vld [vmem:[%s2 + $0x10] sm:$0xff]
    %v63 = vld [vmem:[%s2 + $0x18] sm:$0xff]
    %v64 = vld [vmem:[%s3] sm:$0xff]
    %v65 = vld [vmem:[%s3 + $0x8] sm:$0xff]
    %v66 = vld [vmem:[%s3 + $0x10] sm:$0xff]
    %v67 = vld [vmem:[%s3 + $0x18] sm:$0xff]
    %69 = vset.pattern.permute.xlu0 0
    %70 = vperm.xlu0 %69, %v64
    %v71 = vpop.permute.xlu0 %70
    %74 = vset.pattern.permute.xlu0 0
    %75 = vperm.xlu0 %74, %v65
    %v76 = vpop.permute.xlu0 %75
    %79 = vset.pattern.permute.xlu0 0
    %80 = vperm.xlu0 %79, %v66
    %v81 = vpop.permute.xlu0 %80
    %84 = vset.pattern.permute.xlu0 0
    %85 = vperm.xlu0 %84, %v67
    %v86 = vpop.permute.xlu0 %85
    %vm88 = vcmask 130048
    %v90 = vsel %vm88, %v60, 0
    %v93 = vsel %vm88, %v61, 0
    %v96 = vsel %vm88, %v62, 0
    %v99 = vsel %vm88, %v63, 0
    %101 = vmatprep.subr.mxu0 0.0
    %102 = vmatpush1.msra.mxu0 0.0
    %103 = vmatprep.subr.mxu0 0.0
    %104 = vmatpush1.msra.mxu0 0.0
    %105 = vmatprep.subr.mxu0 0.0
    %106 = vmatpush1.msra.mxu0 0.0
    %107 = vmatprep.subr.mxu0 0.0
    %108 = vmatpush1.msra.mxu0 0.0
    %109 = vmatprep.subr.mxu0 0.0
    %110 = vmatpush1.msra.mxu0 0.0
    %111 = vmatprep.subr.mxu0 0.0
    %112 = vmatpush1.msra.mxu0 0.0
    %113 = vmatprep.subr.mxu0 0.0
    %114 = vmatpush1.msra.mxu0 0.0
    %115 = vmatprep.subr.mxu0 0.0
    %116 = vmatpush1.msra.mxu0 0.0
    %117 = vmatprep.subr.mxu0 0.0
    %118 = vmatpush1.msra.mxu0 0.0
    %119 = vmatprep.subr.mxu0 0.0
    %120 = vmatpush1.msra.mxu0 0.0
    %121 = vmatprep.subr.mxu0 0.0
    %122 = vmatpush1.msra.mxu0 0.0
    %123 = vmatprep.subr.mxu0 0.0
    %124 = vmatpush1.msra.mxu0 0.0
    %125 = vmatprep.subr.mxu0 0.0
    %126 = vmatpush1.msra.mxu0 0.0
    %127 = vmatprep.subr.mxu0 0.0
    %128 = vmatpush1.msra.mxu0 0.0
    %129 = vmatprep.subr.mxu0 0.0
    %v130 = vand.u32 %v59, 4294901760
    %131 = vmatpush1.msra.mxu0 %v130
    %132 = vmatprep.subr.mxu0 0.0
    %v133 = vand.u32 %v58, 4294901760
    %134 = vmatpush1.msra.mxu0 %v133
    %135 = vmatprep.subr.mxu0 0.0
    %136 = vmatpush2.msra.mxu0 0.0
    %137 = vmatprep.subr.mxu0 0.0
    %138 = vmatpush2.msra.mxu0 0.0
    %139 = vmatprep.subr.mxu0 0.0
    %140 = vmatpush2.msra.mxu0 0.0
    %141 = vmatprep.subr.mxu0 0.0
    %142 = vmatpush2.msra.mxu0 0.0
    %143 = vmatprep.subr.mxu0 0.0
    %144 = vmatpush2.msra.mxu0 0.0
    %145 = vmatprep.subr.mxu0 0.0
    %146 = vmatpush2.msra.mxu0 0.0
    %147 = vmatprep.subr.mxu0 0.0
    %148 = vmatpush2.msra.mxu0 0.0
    %149 = vmatprep.subr.mxu0 0.0
    %150 = vmatpush2.msra.mxu0 0.0
    %151 = vmatprep.subr.mxu0 0.0
    %152 = vmatpush2.msra.mxu0 0.0
    %153 = vmatprep.subr.mxu0 0.0
    %154 = vmatpush2.msra.mxu0 0.0
    %155 = vmatprep.subr.mxu0 0.0
    %156 = vmatpush2.msra.mxu0 0.0
    %157 = vmatprep.subr.mxu0 0.0
    %158 = vmatpush2.msra.mxu0 0.0
    %159 = vmatprep.subr.mxu0 0.0
    %160 = vmatpush2.msra.mxu0 0.0
    %161 = vmatprep.subr.mxu0 0.0
    %162 = vmatpush2.msra.mxu0 0.0
    %163 = vmatprep.subr.mxu0 0.0
    %164 = vmatpush2.msra.mxu0 0.0
    %165 = vmatprep.subr.mxu0 0.0
    %166 = vmatpush2.msra.mxu0 0.0
    %167 = vmatprep.mubr.f32.mxu0 0.0
    %v168 = vand.u32 %v90, 4294901760
    %v169 = vsub.f32 %v90, %v168
    %v170 = vand.u32 %v169, 4294901760
    %v171 = vsub.f32 %v169, %v170
    %v172 = vand.u32 %v171, 4294901760
    %173 = vmatmul.mubr.f32.gmra.mxu0 %v172
    %v174 = vpop.f32.mrf.mxu0
    %v175 = vadd.f32 %v71, %v174
    %v176 = vpop.f32.mrf.mxu0
    %177 = vmatprep.mubr.f32.mxu0 0.0
    %v178 = vand.u32 %v93, 4294901760
    %v179 = vsub.f32 %v93, %v178
    %v180 = vand.u32 %v179, 4294901760
    %v181 = vsub.f32 %v179, %v180
    %v182 = vand.u32 %v181, 4294901760
    %183 = vmatmul.mubr.f32.gmra.mxu0 %v182
    %v184 = vpop.f32.mrf.mxu0
    %v185 = vadd.f32 %v76, %v184
    %v186 = vpop.f32.mrf.mxu0
    %187 = vmatprep.mubr.f32.mxu0 0.0
    %v188 = vand.u32 %v96, 4294901760
    %v189 = vsub.f32 %v96, %v188
    %v190 = vand.u32 %v189, 4294901760
    %v191 = vsub.f32 %v189, %v190
    %v192 = vand.u32 %v191, 4294901760
    %193 = vmatmul.mubr.f32.gmra.mxu0 %v192
    %v194 = vpop.f32.mrf.mxu0
    %v195 = vadd.f32 %v81, %v194
    %v196 = vpop.f32.mrf.mxu0
    %197 = vmatprep.mubr.f32.mxu0 0.0
    %v198 = vand.u32 %v99, 4294901760
    %v199 = vsub.f32 %v99, %v198
    %v200 = vand.u32 %v199, 4294901760
    %v201 = vsub.f32 %v199, %v200
    %v202 = vand.u32 %v201, 4294901760
    %203 = vmatmul.mubr.f32.gmra.mxu0 %v202
    %v204 = vpop.f32.mrf.mxu0
    %v205 = vadd.f32 %v86, %v204
    %v206 = vpop.f32.mrf.mxu0
    %207 = vdwg.mxu0
    %208 = vmatprep.subr.mxu0 0.0
    %209 = vmatpush1.msra.mxu0 0.0
    %210 = vmatprep.subr.mxu0 0.0
    %211 = vmatpush1.msra.mxu0 0.0
    %212 = vmatprep.subr.mxu0 0.0
    %213 = vmatpush1.msra.mxu0 0.0
    %214 = vmatprep.subr.mxu0 0.0
    %215 = vmatpush1.msra.mxu0 0.0
    %216 = vmatprep.subr.mxu0 0.0
    %217 = vmatpush1.msra.mxu0 0.0
    %218 = vmatprep.subr.mxu0 0.0
    %219 = vmatpush1.msra.mxu0 0.0
    %220 = vmatprep.subr.mxu0 0.0
    %221 = vmatpush1.msra.mxu0 0.0
    %222 = vmatprep.subr.mxu0 0.0
    %223 = vmatpush1.msra.mxu0 0.0
    %224 = vmatprep.subr.mxu0 0.0
    %225 = vmatpush1.msra.mxu0 0.0
    %226 = vmatprep.subr.mxu0 0.0
    %227 = vmatpush1.msra.mxu0 0.0
    %228 = vmatprep.subr.mxu0 0.0
    %229 = vmatpush1.msra.mxu0 0.0
    %230 = vmatprep.subr.mxu0 0.0
    %231 = vmatpush1.msra.mxu0 0.0
    %232 = vmatprep.subr.mxu0 0.0
    %233 = vmatpush1.msra.mxu0 0.0
    %234 = vmatprep.subr.mxu0 0.0
    %235 = vmatpush1.msra.mxu0 0.0
    %236 = vmatprep.subr.mxu0 0.0
    %v237 = vand.u32 %v59, 4294901760
    %v238 = vsub.f32 %v59, %v237
    %v239 = vand.u32 %v238, 4294901760
    %v240 = vsub.f32 %v238, %v239
    %v241 = vand.u32 %v240, 4294901760
    %242 = vmatpush1.msra.mxu0 %v241
    %243 = vmatprep.subr.mxu0 0.0
    %v244 = vand.u32 %v58, 4294901760
    %v245 = vsub.f32 %v58, %v244
    %v246 = vand.u32 %v245, 4294901760
    %v247 = vsub.f32 %v245, %v246
    %v248 = vand.u32 %v247, 4294901760
    %249 = vmatpush1.msra.mxu0 %v248
    %250 = vmatprep.subr.mxu0 0.0
    %251 = vmatpush2.msra.mxu0 0.0
    %252 = vmatprep.subr.mxu0 0.0
    %253 = vmatpush2.msra.mxu0 0.0
    %254 = vmatprep.subr.mxu0 0.0
    %255 = vmatpush2.msra.mxu0 0.0
    %256 = vmatprep.subr.mxu0 0.0
    %257 = vmatpush2.msra.mxu0 0.0
    %258 = vmatprep.subr.mxu0 0.0
    %259 = vmatpush2.msra.mxu0 0.0
    %260 = vmatprep.subr.mxu0 0.0
    %261 = vmatpush2.msra.mxu0 0.0
    %262 = vmatprep.subr.mxu0 0.0
    %263 = vmatpush2.msra.mxu0 0.0
    %264 = vmatprep.subr.mxu0 0.0
    %265 = vmatpush2.msra.mxu0 0.0
    %266 = vmatprep.subr.mxu0 0.0
    %267 = vmatpush2.msra.mxu0 0.0
    %268 = vmatprep.subr.mxu0 0.0
    %269 = vmatpush2.msra.mxu0 0.0
    %270 = vmatprep.subr.mxu0 0.0
    %271 = vmatpush2.msra.mxu0 0.0
    %272 = vmatprep.subr.mxu0 0.0
    %273 = vmatpush2.msra.mxu0 0.0
    %274 = vmatprep.subr.mxu0 0.0
    %275 = vmatpush2.msra.mxu0 0.0
    %276 = vmatprep.subr.mxu0 0.0
    %277 = vmatpush2.msra.mxu0 0.0
    %278 = vmatprep.subr.mxu0 0.0
    %279 = vmatpush2.msra.mxu0 0.0
    %280 = vmatprep.subr.mxu0 0.0
    %281 = vmatpush2.msra.mxu0 0.0
    %282 = vmatprep.mubr.f32.mxu0 0.0
    %v283 = vand.u32 %v90, 4294901760
    %284 = vmatmul.mubr.f32.gmra.mxu0 %v283
    %v285 = vpop.f32.mrf.mxu0
    %v286 = vadd.f32 %v175, %v285
    %v287 = vpop.f32.mrf.mxu0
    %288 = vmatprep.mubr.f32.mxu0 0.0
    %v289 = vand.u32 %v93, 4294901760
    %290 = vmatmul.mubr.f32.gmra.mxu0 %v289
    %v291 = vpop.f32.mrf.mxu0
    %v292 = vadd.f32 %v185, %v291
    %v293 = vpop.f32.mrf.mxu0
    %294 = vmatprep.mubr.f32.mxu0 0.0
    %v295 = vand.u32 %v96, 4294901760
    %296 = vmatmul.mubr.f32.gmra.mxu0 %v295
    %v297 = vpop.f32.mrf.mxu0
    %v298 = vadd.f32 %v195, %v297
    %v299 = vpop.f32.mrf.mxu0
    %300 = vmatprep.mubr.f32.mxu0 0.0
    %v301 = vand.u32 %v99, 4294901760
    %302 = vmatmul.mubr.f32.gmra.mxu0 %v301
    %v303 = vpop.f32.mrf.mxu0
    %v304 = vadd.f32 %v205, %v303
    %v305 = vpop.f32.mrf.mxu0
    %306 = vdwg.mxu0
    %307 = vmatprep.subr.mxu0 0.0
    %308 = vmatpush1.msra.mxu0 0.0
    %309 = vmatprep.subr.mxu0 0.0
    %310 = vmatpush1.msra.mxu0 0.0
    %311 = vmatprep.subr.mxu0 0.0
    %312 = vmatpush1.msra.mxu0 0.0
    %313 = vmatprep.subr.mxu0 0.0
    %314 = vmatpush1.msra.mxu0 0.0
    %315 = vmatprep.subr.mxu0 0.0
    %316 = vmatpush1.msra.mxu0 0.0
    %317 = vmatprep.subr.mxu0 0.0
    %318 = vmatpush1.msra.mxu0 0.0
    %319 = vmatprep.subr.mxu0 0.0
    %320 = vmatpush1.msra.mxu0 0.0
    %321 = vmatprep.subr.mxu0 0.0
    %322 = vmatpush1.msra.mxu0 0.0
    %323 = vmatprep.subr.mxu0 0.0
    %324 = vmatpush1.msra.mxu0 0.0
    %325 = vmatprep.subr.mxu0 0.0
    %326 = vmatpush1.msra.mxu0 0.0
    %327 = vmatprep.subr.mxu0 0.0
    %328 = vmatpush1.msra.mxu0 0.0
    %329 = vmatprep.subr.mxu0 0.0
    %330 = vmatpush1.msra.mxu0 0.0
    %331 = vmatprep.subr.mxu0 0.0
    %332 = vmatpush1.msra.mxu0 0.0
    %333 = vmatprep.subr.mxu0 0.0
    %334 = vmatpush1.msra.mxu0 0.0
    %335 = vmatprep.subr.mxu0 0.0
    %v336 = vand.u32 %v59, 4294901760
    %v337 = vsub.f32 %v59, %v336
    %338 = vmatpush1.msra.mxu0 %v337
    %339 = vmatprep.subr.mxu0 0.0
    %v340 = vand.u32 %v58, 4294901760
    %v341 = vsub.f32 %v58, %v340
    %342 = vmatpush1.msra.mxu0 %v341
    %343 = vmatprep.subr.mxu0 0.0
    %344 = vmatpush2.msra.mxu0 0.0
    %345 = vmatprep.subr.mxu0 0.0
    %346 = vmatpush2.msra.mxu0 0.0
    %347 = vmatprep.subr.mxu0 0.0
    %348 = vmatpush2.msra.mxu0 0.0
    %349 = vmatprep.subr.mxu0 0.0
    %350 = vmatpush2.msra.mxu0 0.0
    %351 = vmatprep.subr.mxu0 0.0
    %352 = vmatpush2.msra.mxu0 0.0
    %353 = vmatprep.subr.mxu0 0.0
    %354 = vmatpush2.msra.mxu0 0.0
    %355 = vmatprep.subr.mxu0 0.0
    %356 = vmatpush2.msra.mxu0 0.0
    %357 = vmatprep.subr.mxu0 0.0
    %358 = vmatpush2.msra.mxu0 0.0
    %359 = vmatprep.subr.mxu0 0.0
    %360 = vmatpush2.msra.mxu0 0.0
    %361 = vmatprep.subr.mxu0 0.0
    %362 = vmatpush2.msra.mxu0 0.0
    %363 = vmatprep.subr.mxu0 0.0
    %364 = vmatpush2.msra.mxu0 0.0
    %365 = vmatprep.subr.mxu0 0.0
    %366 = vmatpush2.msra.mxu0 0.0
    %367 = vmatprep.subr.mxu0 0.0
    %368 = vmatpush2.msra.mxu0 0.0
    %369 = vmatprep.subr.mxu0 0.0
    %370 = vmatpush2.msra.mxu0 0.0
    %371 = vmatprep.subr.mxu0 0.0
    %372 = vmatpush2.msra.mxu0 0.0
    %373 = vmatprep.subr.mxu0 0.0
    %374 = vmatpush2.msra.mxu0 0.0
    %375 = vmatprep.mubr.f32.mxu0 0.0
    %v376 = vand.u32 %v90, 4294901760
    %v377 = vsub.f32 %v90, %v376
    %378 = vmatmul.mubr.f32.gmra.mxu0 %v377
    %v379 = vpop.f32.mrf.mxu0
    %v380 = vadd.f32 %v286, %v379
    %v381 = vpop.f32.mrf.mxu0
    %382 = vmatprep.mubr.f32.mxu0 0.0
    %v383 = vand.u32 %v93, 4294901760
    %v384 = vsub.f32 %v93, %v383
    %385 = vmatmul.mubr.f32.gmra.mxu0 %v384
    %v386 = vpop.f32.mrf.mxu0
    %v387 = vadd.f32 %v292, %v386
    %v388 = vpop.f32.mrf.mxu0
    %389 = vmatprep.mubr.f32.mxu0 0.0
    %v390 = vand.u32 %v96, 4294901760
    %v391 = vsub.f32 %v96, %v390
    %392 = vmatmul.mubr.f32.gmra.mxu0 %v391
    %v393 = vpop.f32.mrf.mxu0
    %v394 = vadd.f32 %v298, %v393
    %v395 = vpop.f32.mrf.mxu0
    %396 = vmatprep.mubr.f32.mxu0 0.0
    %v397 = vand.u32 %v99, 4294901760
    %v398 = vsub.f32 %v99, %v397
    %399 = vmatmul.mubr.f32.gmra.mxu0 %v398
    %v400 = vpop.f32.mrf.mxu0
    %v401 = vadd.f32 %v304, %v400
    %v402 = vpop.f32.mrf.mxu0
    %403 = vdwg.mxu0
    %404 = vmatprep.subr.mxu0 0.0
    %405 = vmatpush1.msra.mxu0 0.0
    %406 = vmatprep.subr.mxu0 0.0
    %407 = vmatpush1.msra.mxu0 0.0
    %408 = vmatprep.subr.mxu0 0.0
    %409 = vmatpush1.msra.mxu0 0.0
    %410 = vmatprep.subr.mxu0 0.0
    %411 = vmatpush1.msra.mxu0 0.0
    %412 = vmatprep.subr.mxu0 0.0
    %413 = vmatpush1.msra.mxu0 0.0
    %414 = vmatprep.subr.mxu0 0.0
    %415 = vmatpush1.msra.mxu0 0.0
    %416 = vmatprep.subr.mxu0 0.0
    %417 = vmatpush1.msra.mxu0 0.0
    %418 = vmatprep.subr.mxu0 0.0
    %419 = vmatpush1.msra.mxu0 0.0
    %420 = vmatprep.subr.mxu0 0.0
    %421 = vmatpush1.msra.mxu0 0.0
    %422 = vmatprep.subr.mxu0 0.0
    %423 = vmatpush1.msra.mxu0 0.0
    %424 = vmatprep.subr.mxu0 0.0
    %425 = vmatpush1.msra.mxu0 0.0
    %426 = vmatprep.subr.mxu0 0.0
    %427 = vmatpush1.msra.mxu0 0.0
    %428 = vmatprep.subr.mxu0 0.0
    %429 = vmatpush1.msra.mxu0 0.0
    %430 = vmatprep.subr.mxu0 0.0
    %431 = vmatpush1.msra.mxu0 0.0
    %432 = vmatprep.subr.mxu0 0.0
    %v433 = vand.u32 %v59, 4294901760
    %434 = vmatpush1.msra.mxu0 %v433
    %435 = vmatprep.subr.mxu0 0.0
    %v436 = vand.u32 %v58, 4294901760
    %437 = vmatpush1.msra.mxu0 %v436
    %438 = vmatprep.subr.mxu0 0.0
    %439 = vmatpush2.msra.mxu0 0.0
    %440 = vmatprep.subr.mxu0 0.0
    %441 = vmatpush2.msra.mxu0 0.0
    %442 = vmatprep.subr.mxu0 0.0
    %443 = vmatpush2.msra.mxu0 0.0
    %444 = vmatprep.subr.mxu0 0.0
    %445 = vmatpush2.msra.mxu0 0.0
    %446 = vmatprep.subr.mxu0 0.0
    %447 = vmatpush2.msra.mxu0 0.0
    %448 = vmatprep.subr.mxu0 0.0
    %449 = vmatpush2.msra.mxu0 0.0
    %450 = vmatprep.subr.mxu0 0.0
    %451 = vmatpush2.msra.mxu0 0.0
    %452 = vmatprep.subr.mxu0 0.0
    %453 = vmatpush2.msra.mxu0 0.0
    %454 = vmatprep.subr.mxu0 0.0
    %455 = vmatpush2.msra.mxu0 0.0
    %456 = vmatprep.subr.mxu0 0.0
    %457 = vmatpush2.msra.mxu0 0.0
    %458 = vmatprep.subr.mxu0 0.0
    %459 = vmatpush2.msra.mxu0 0.0
    %460 = vmatprep.subr.mxu0 0.0
    %461 = vmatpush2.msra.mxu0 0.0
    %462 = vmatprep.subr.mxu0 0.0
    %463 = vmatpush2.msra.mxu0 0.0
    %464 = vmatprep.subr.mxu0 0.0
    %465 = vmatpush2.msra.mxu0 0.0
    %466 = vmatprep.subr.mxu0 0.0
    %467 = vmatpush2.msra.mxu0 0.0
    %468 = vmatprep.subr.mxu0 0.0
    %469 = vmatpush2.msra.mxu0 0.0
    %470 = vmatprep.mubr.f32.mxu0 0.0
    %v471 = vand.u32 %v90, 4294901760
    %v472 = vsub.f32 %v90, %v471
    %v473 = vand.u32 %v472, 4294901760
    %474 = vmatmul.mubr.f32.gmra.mxu0 %v473
    %v475 = vpop.f32.mrf.mxu0
    %v476 = vadd.f32 %v380, %v475
    %v477 = vpop.f32.mrf.mxu0
    %478 = vmatprep.mubr.f32.mxu0 0.0
    %v479 = vand.u32 %v93, 4294901760
    %v480 = vsub.f32 %v93, %v479
    %v481 = vand.u32 %v480, 4294901760
    %482 = vmatmul.mubr.f32.gmra.mxu0 %v481
    %v483 = vpop.f32.mrf.mxu0
    %v484 = vadd.f32 %v387, %v483
    %v485 = vpop.f32.mrf.mxu0
    %486 = vmatprep.mubr.f32.mxu0 0.0
    %v487 = vand.u32 %v96, 4294901760
    %v488 = vsub.f32 %v96, %v487
    %v489 = vand.u32 %v488, 4294901760
    %490 = vmatmul.mubr.f32.gmra.mxu0 %v489
    %v491 = vpop.f32.mrf.mxu0
    %v492 = vadd.f32 %v394, %v491
    %v493 = vpop.f32.mrf.mxu0
    %494 = vmatprep.mubr.f32.mxu0 0.0
    %v495 = vand.u32 %v99, 4294901760
    %v496 = vsub.f32 %v99, %v495
    %v497 = vand.u32 %v496, 4294901760
    %498 = vmatmul.mubr.f32.gmra.mxu0 %v497
    %v499 = vpop.f32.mrf.mxu0
    %v500 = vadd.f32 %v401, %v499
    %v501 = vpop.f32.mrf.mxu0
    %502 = vdwg.mxu0
    %503 = vmatprep.subr.mxu0 0.0
    %504 = vmatpush1.msra.mxu0 0.0
    %505 = vmatprep.subr.mxu0 0.0
    %506 = vmatpush1.msra.mxu0 0.0
    %507 = vmatprep.subr.mxu0 0.0
    %508 = vmatpush1.msra.mxu0 0.0
    %509 = vmatprep.subr.mxu0 0.0
    %510 = vmatpush1.msra.mxu0 0.0
    %511 = vmatprep.subr.mxu0 0.0
    %512 = vmatpush1.msra.mxu0 0.0
    %513 = vmatprep.subr.mxu0 0.0
    %514 = vmatpush1.msra.mxu0 0.0
    %515 = vmatprep.subr.mxu0 0.0
    %516 = vmatpush1.msra.mxu0 0.0
    %517 = vmatprep.subr.mxu0 0.0
    %518 = vmatpush1.msra.mxu0 0.0
    %519 = vmatprep.subr.mxu0 0.0
    %520 = vmatpush1.msra.mxu0 0.0
    %521 = vmatprep.subr.mxu0 0.0
    %522 = vmatpush1.msra.mxu0 0.0
    %523 = vmatprep.subr.mxu0 0.0
    %524 = vmatpush1.msra.mxu0 0.0
    %525 = vmatprep.subr.mxu0 0.0
    %526 = vmatpush1.msra.mxu0 0.0
    %527 = vmatprep.subr.mxu0 0.0
    %528 = vmatpush1.msra.mxu0 0.0
    %529 = vmatprep.subr.mxu0 0.0
    %530 = vmatpush1.msra.mxu0 0.0
    %531 = vmatprep.subr.mxu0 0.0
    %v532 = vand.u32 %v59, 4294901760
    %v533 = vsub.f32 %v59, %v532
    %v534 = vand.u32 %v533, 4294901760
    %535 = vmatpush1.msra.mxu0 %v534
    %536 = vmatprep.subr.mxu0 0.0
    %v537 = vand.u32 %v58, 4294901760
    %v538 = vsub.f32 %v58, %v537
    %v539 = vand.u32 %v538, 4294901760
    %540 = vmatpush1.msra.mxu0 %v539
    %541 = vmatprep.subr.mxu0 0.0
    %542 = vmatpush2.msra.mxu0 0.0
    %543 = vmatprep.subr.mxu0 0.0
    %544 = vmatpush2.msra.mxu0 0.0
    %545 = vmatprep.subr.mxu0 0.0
    %546 = vmatpush2.msra.mxu0 0.0
    %547 = vmatprep.subr.mxu0 0.0
    %548 = vmatpush2.msra.mxu0 0.0
    %549 = vmatprep.subr.mxu0 0.0
    %550 = vmatpush2.msra.mxu0 0.0
    %551 = vmatprep.subr.mxu0 0.0
    %552 = vmatpush2.msra.mxu0 0.0
    %553 = vmatprep.subr.mxu0 0.0
    %554 = vmatpush2.msra.mxu0 0.0
    %555 = vmatprep.subr.mxu0 0.0
    %556 = vmatpush2.msra.mxu0 0.0
    %557 = vmatprep.subr.mxu0 0.0
    %558 = vmatpush2.msra.mxu0 0.0
    %559 = vmatprep.subr.mxu0 0.0
    %560 = vmatpush2.msra.mxu0 0.0
    %561 = vmatprep.subr.mxu0 0.0
    %562 = vmatpush2.msra.mxu0 0.0
    %563 = vmatprep.subr.mxu0 0.0
    %564 = vmatpush2.msra.mxu0 0.0
    %565 = vmatprep.subr.mxu0 0.0
    %566 = vmatpush2.msra.mxu0 0.0
    %567 = vmatprep.subr.mxu0 0.0
    %568 = vmatpush2.msra.mxu0 0.0
    %569 = vmatprep.subr.mxu0 0.0
    %570 = vmatpush2.msra.mxu0 0.0
    %571 = vmatprep.subr.mxu0 0.0
    %572 = vmatpush2.msra.mxu0 0.0
    %573 = vmatprep.mubr.f32.mxu0 0.0
    %v574 = vand.u32 %v90, 4294901760
    %575 = vmatmul.mubr.f32.gmra.mxu0 %v574
    %v576 = vpop.f32.mrf.mxu0
    %v577 = vadd.f32 %v476, %v576
    %v578 = vpop.f32.mrf.mxu0
    %579 = vmatprep.mubr.f32.mxu0 0.0
    %v580 = vand.u32 %v93, 4294901760
    %581 = vmatmul.mubr.f32.gmra.mxu0 %v580
    %v582 = vpop.f32.mrf.mxu0
    %v583 = vadd.f32 %v484, %v582
    %v584 = vpop.f32.mrf.mxu0
    %585 = vmatprep.mubr.f32.mxu0 0.0
    %v586 = vand.u32 %v96, 4294901760
    %587 = vmatmul.mubr.f32.gmra.mxu0 %v586
    %v588 = vpop.f32.mrf.mxu0
    %v589 = vadd.f32 %v492, %v588
    %v590 = vpop.f32.mrf.mxu0
    %591 = vmatprep.mubr.f32.mxu0 0.0
    %v592 = vand.u32 %v99, 4294901760
    %593 = vmatmul.mubr.f32.gmra.mxu0 %v592
    %v594 = vpop.f32.mrf.mxu0
    %v595 = vadd.f32 %v500, %v594
    %v596 = vpop.f32.mrf.mxu0
    %597 = vdwg.mxu0
    %598 = vmatprep.subr.mxu0 0.0
    %599 = vmatpush1.msra.mxu0 0.0
    %600 = vmatprep.subr.mxu0 0.0
    %601 = vmatpush1.msra.mxu0 0.0
    %602 = vmatprep.subr.mxu0 0.0
    %603 = vmatpush1.msra.mxu0 0.0
    %604 = vmatprep.subr.mxu0 0.0
    %605 = vmatpush1.msra.mxu0 0.0
    %606 = vmatprep.subr.mxu0 0.0
    %607 = vmatpush1.msra.mxu0 0.0
    %608 = vmatprep.subr.mxu0 0.0
    %609 = vmatpush1.msra.mxu0 0.0
    %610 = vmatprep.subr.mxu0 0.0
    %611 = vmatpush1.msra.mxu0 0.0
    %612 = vmatprep.subr.mxu0 0.0
    %613 = vmatpush1.msra.mxu0 0.0
    %614 = vmatprep.subr.mxu0 0.0
    %615 = vmatpush1.msra.mxu0 0.0
    %616 = vmatprep.subr.mxu0 0.0
    %617 = vmatpush1.msra.mxu0 0.0
    %618 = vmatprep.subr.mxu0 0.0
    %619 = vmatpush1.msra.mxu0 0.0
    %620 = vmatprep.subr.mxu0 0.0
    %621 = vmatpush1.msra.mxu0 0.0
    %622 = vmatprep.subr.mxu0 0.0
    %623 = vmatpush1.msra.mxu0 0.0
    %624 = vmatprep.subr.mxu0 0.0
    %625 = vmatpush1.msra.mxu0 0.0
    %626 = vmatprep.subr.mxu0 0.0
    %v627 = vand.u32 %v59, 4294901760
    %628 = vmatpush1.msra.mxu0 %v627
    %629 = vmatprep.subr.mxu0 0.0
    %v630 = vand.u32 %v58, 4294901760
    %631 = vmatpush1.msra.mxu0 %v630
    %632 = vmatprep.subr.mxu0 0.0
    %633 = vmatpush2.msra.mxu0 0.0
    %634 = vmatprep.subr.mxu0 0.0
    %635 = vmatpush2.msra.mxu0 0.0
    %636 = vmatprep.subr.mxu0 0.0
    %637 = vmatpush2.msra.mxu0 0.0
    %638 = vmatprep.subr.mxu0 0.0
    %639 = vmatpush2.msra.mxu0 0.0
    %640 = vmatprep.subr.mxu0 0.0
    %641 = vmatpush2.msra.mxu0 0.0
    %642 = vmatprep.subr.mxu0 0.0
    %643 = vmatpush2.msra.mxu0 0.0
    %644 = vmatprep.subr.mxu0 0.0
    %645 = vmatpush2.msra.mxu0 0.0
    %646 = vmatprep.subr.mxu0 0.0
    %647 = vmatpush2.msra.mxu0 0.0
    %648 = vmatprep.subr.mxu0 0.0
    %649 = vmatpush2.msra.mxu0 0.0
    %650 = vmatprep.subr.mxu0 0.0
    %651 = vmatpush2.msra.mxu0 0.0
    %652 = vmatprep.subr.mxu0 0.0
    %653 = vmatpush2.msra.mxu0 0.0
    %654 = vmatprep.subr.mxu0 0.0
    %655 = vmatpush2.msra.mxu0 0.0
    %656 = vmatprep.subr.mxu0 0.0
    %657 = vmatpush2.msra.mxu0 0.0
    %658 = vmatprep.subr.mxu0 0.0
    %659 = vmatpush2.msra.mxu0 0.0
    %660 = vmatprep.subr.mxu0 0.0
    %661 = vmatpush2.msra.mxu0 0.0
    %662 = vmatprep.subr.mxu0 0.0
    %663 = vmatpush2.msra.mxu0 0.0
    %664 = vmatprep.mubr.f32.mxu0 0.0
    %v665 = vand.u32 %v90, 4294901760
    %666 = vmatmul.mubr.f32.gmra.mxu0 %v665
    %v667 = vpop.f32.mrf.mxu0
    %v668 = vadd.f32 %v577, %v667
    %v669 = vpop.f32.mrf.mxu0
    %670 = vmatprep.mubr.f32.mxu0 0.0
    %v671 = vand.u32 %v93, 4294901760
    %672 = vmatmul.mubr.f32.gmra.mxu0 %v671
    %v673 = vpop.f32.mrf.mxu0
    %v674 = vadd.f32 %v583, %v673
    %v675 = vpop.f32.mrf.mxu0
    %676 = vmatprep.mubr.f32.mxu0 0.0
    %v677 = vand.u32 %v96, 4294901760
    %678 = vmatmul.mubr.f32.gmra.mxu0 %v677
    %v679 = vpop.f32.mrf.mxu0
    %v680 = vadd.f32 %v589, %v679
    %v681 = vpop.f32.mrf.mxu0
    %682 = vmatprep.mubr.f32.mxu0 0.0
    %v683 = vand.u32 %v99, 4294901760
    %684 = vmatmul.mubr.f32.gmra.mxu0 %v683
    %v685 = vpop.f32.mrf.mxu0
    %v686 = vadd.f32 %v595, %v685
    %v687 = vpop.f32.mrf.mxu0
    %688 = vdwg.mxu0
    %689 = vst [vmem:[#allocation2] sm:$0xff] %v668
    %690 = vst [vmem:[#allocation2 + $0x8] sm:$0xff] %v674
    %691 = vst [vmem:[#allocation2 + $0x10] sm:$0xff] %v680
    %692 = vst [vmem:[#allocation2 + $0x18] sm:$0xff] %v686
    // Predicated region
    $region18: #{tpu_custom_call.1} parent=1 // pred_check
      _
    $region19: #{tpu_custom_call.1} parent=1 // pred_check_branch
      %694 = sbr.rel (0) target = $region21
    $region20: #{tpu_custom_call.1} parent=1 // pred_region
      %s696 = ssub.s32 512, 512
      %697 = vsyncadd [#allocation3], %s696
      %s698 = sshll.u32 [#allocation2], 4
      %s699 = int_to_ptr.vmem [resolvable:$true] %s698
      %704 = dma.vmem_to_hbm [thread:$0]  %s699, 512, %s4, [#allocation3], 128, 128, 8
    $region21: #{tpu_custom_call.1} parent=1 // pred_fallthru
      _
    // Predicated region
    $region22: #{tpu_custom_call.1} parent=1 // pred_check
      _
    $region23: #{tpu_custom_call.1} parent=1 // pred_check_branch
      %706 = sbr.rel (0) target = $region25
    $region24: #{tpu_custom_call.1} parent=1 // pred_region
      %707 = dma.done [#allocation3], 512
    $region25: #{tpu_custom_call.1} parent=1 // pred_fallthru
      _
    %708 = vsyncpa [#allocation3], 1

</llo_original>
